<compile_context>
chip_gen: v7x
topology: tpu7x:2x2x1
jax: 0.10.0
libtpu: 0.0.40
codegen_flags: <defaults>
</compile_context>

<pallas_src>
import functools

import jax
import jax.numpy as jnp
from jax.experimental import pallas as pl
from jax.experimental.pallas import tpu as pltpu

_VMEM_LIMIT = 48 * 1024 * 1024  # fits v5e/v6e (128 MiB) and v7x (64 MiB/TC)


def _row_tile(n):
    """Largest 'nice' row tile that divides n (falls back to full extent)."""
    for t in (512, 256, 128, 64, 32, 16, 8):
        if n % t == 0:
            return t
    return n


# ---------------------------------------------------------------------------
# Kernel 1: fused projections, both streams written into one [2, N, F] slab.
#   stream 0: x     = relu(x_aa_emb @ W_aa + b_aa + (x_esm_raw @ W_esm + b_esm))
#   stream 1: x_esm = relu(x_esm_raw @ W_esm + b_esm)
# ---------------------------------------------------------------------------
def _proj_kernel(aa_ref, waa_ref, baa_ref, esm_ref, wesm_ref, besm_ref, x_ref):
    esm_pre = jnp.dot(esm_ref[...], wesm_ref[...],
                      preferred_element_type=jnp.float32) + besm_ref[...]
    aa = jnp.dot(aa_ref[...], waa_ref[...],
                 preferred_element_type=jnp.float32) + baa_ref[...]
    x_ref[0] = jnp.maximum(aa + esm_pre, 0.0).astype(x_ref.dtype)
    x_ref[1] = jnp.maximum(esm_pre, 0.0).astype(x_ref.dtype)


def fused_projection(x_aa_emb, w_aa, b_aa, x_esm_raw, w_esm, b_esm):
    N, Kaa = x_aa_emb.shape
    _, Kesm = x_esm_raw.shape
    F = w_aa.shape[1]
    tm = _row_tile(N)
    return pl.pallas_call(
        _proj_kernel,
        out_shape=jax.ShapeDtypeStruct((2, N, F), jnp.bfloat16),
        grid=(N // tm,),
        in_specs=[
            pl.BlockSpec((tm, Kaa), lambda i: (i, 0)),
            pl.BlockSpec((Kaa, F), lambda i: (0, 0)),
            pl.BlockSpec((1, F), lambda i: (0, 0)),
            pl.BlockSpec((tm, Kesm), lambda i: (i, 0)),
            pl.BlockSpec((Kesm, F), lambda i: (0, 0)),
            pl.BlockSpec((1, F), lambda i: (0, 0)),
        ],
        out_specs=pl.BlockSpec((2, tm, F), lambda i: (0, i, 0)),
        compiler_params=pltpu.CompilerParams(
            dimension_semantics=("parallel",),
            vmem_limit_bytes=_VMEM_LIMIT),
    )(x_aa_emb, w_aa, b_aa.reshape(1, F), x_esm_raw, w_esm, b_esm.reshape(1, F))


# ---------------------------------------------------------------------------
# Kernel 2: fused 3-layer GCN stack + graph pooling, grid over the 2 streams.
#   adjacency / weights / pool matrix stay resident in VMEM (same block index
#   for every grid step). Same GCN weights applied to both streams (as in the
#   PyTorch model, which reuses self.gcn).
# ---------------------------------------------------------------------------
def _gcn_stack_kernel(x_ref, a_ref, w_ref, b_ref, p_ref, g_ref, *, n_layers):
    a = a_ref[...]                                  # [N, N] bf16, VMEM-resident
    h = x_ref[0]                                    # [N, F] bf16 (layer-0 input)
    for l in range(n_layers):                       # unrolled, 3 layers
        xw = jnp.dot(h.astype(jnp.bfloat16), w_ref[l],
                     preferred_element_type=jnp.float32)
        z = jnp.dot(a, xw.astype(jnp.bfloat16),
                    preferred_element_type=jnp.float32) + b_ref[l]
        z = jnp.maximum(z, 0.0)
        # layer 0: no residual; later layers: f32 residual accumulation
        h = z if l == 0 else h + z
    # TODO(synk): MHA pooling not defined in the reference; mean pooling instead.
    g_ref[0] = jnp.dot(p_ref[...], h.astype(jnp.bfloat16),
                       preferred_element_type=jnp.float32)


def gcn_stack_and_pool(x_both, a_norm_bf16, gcn_w, gcn_b, pool_mat_bf16):
    S, N, F = x_both.shape
    L = gcn_w.shape[0]
    G = pool_mat_bf16.shape[0]
    return pl.pallas_call(
        functools.partial(_gcn_stack_kernel, n_layers=L),
        out_shape=jax.ShapeDtypeStruct((S, G, F), jnp.float32),
        grid=(S,),
        in_specs=[
            pl.BlockSpec((1, N, F), lambda s: (s, 0, 0)),   # per-stream features
            pl.BlockSpec((N, N), lambda s: (0, 0)),         # adjacency (resident)
            pl.BlockSpec((L, F, F), lambda s: (0, 0, 0)),   # stacked GCN weights
            pl.BlockSpec((L, 1, F), lambda s: (0, 0, 0)),   # stacked GCN biases
            pl.BlockSpec((G, N), lambda s: (0, 0)),         # pooling matrix
        ],
        out_specs=pl.BlockSpec((1, G, F), lambda s: (s, 0, 0)),
        compiler_params=pltpu.CompilerParams(
            dimension_semantics=("parallel",),
            vmem_limit_bytes=_VMEM_LIMIT),
    )(x_both, a_norm_bf16, gcn_w, gcn_b, pool_mat_bf16)


# ---------------------------------------------------------------------------
# Kernel 3: fused readout
#   g = w1[0]*g0 + w1[1]*g1 ; y = sigmoid(relu(g @ W1 + b1) @ W2 + b2)
# ---------------------------------------------------------------------------
def _readout_kernel(w1_ref, g_ref, r1w_ref, r1b_ref, r2w_ref, r2b_ref, o_ref):
    g = w1_ref[0] * g_ref[0] + w1_ref[1] * g_ref[1]          # [G, F] f32
    h = jnp.dot(g.astype(jnp.bfloat16), r1w_ref[...],
                preferred_element_type=jnp.float32) + r1b_ref[...]
    h = jnp.maximum(h, 0.0)
    y = jnp.dot(h.astype(jnp.bfloat16), r2w_ref[...],
                preferred_element_type=jnp.float32) + r2b_ref[...]
    o_ref[...] = jax.nn.sigmoid(y)


def fused_readout(weight1, g_both, r1w, r1b, r2w, r2b):
    S, G, F = g_both.shape
    H = r1w.shape[1]
    P = r2w.shape[1]                                          # lane-padded out dim
    return pl.pallas_call(
        _readout_kernel,
        out_shape=jax.ShapeDtypeStruct((G, P), jnp.float32),
        grid=(1,),
        in_specs=[
            pl.BlockSpec(memory_space=pltpu.MemorySpace.SMEM),  # weight1 scalars
            pl.BlockSpec((S, G, F), lambda i: (0, 0, 0)),
            pl.BlockSpec((F, H), lambda i: (0, 0)),
            pl.BlockSpec((1, H), lambda i: (0, 0)),
            pl.BlockSpec((H, P), lambda i: (0, 0)),
            pl.BlockSpec((1, P), lambda i: (0, 0)),
        ],
        out_specs=pl.BlockSpec((G, P), lambda i: (0, 0)),
        compiler_params=pltpu.CompilerParams(
            dimension_semantics=("arbitrary",),
            vmem_limit_bytes=_VMEM_LIMIT),
    )(weight1, g_both, r1w, r1b.reshape(1, H), r2w, r2b.reshape(1, P))


# ---------------------------------------------------------------------------
# Glue: parameters, adjacency normalization, model assembly
# ---------------------------------------------------------------------------
def init_params(key, out_dim):
    ks = jax.random.split(key, 16)
    s = 0.02

    def w(k, shape):
        return jax.random.normal(k, shape, dtype=jnp.float32) * s

    return {
        "emb": w(ks[0], (21, 96)),
        "proj_aa_w": w(ks[1], (96, 512)),
        "proj_aa_b": w(ks[2], (512,)),
        "proj_esm_w": w(ks[3], (1280, 512)),
        "proj_esm_b": w(ks[4], (512,)),
        "gcn_w": [w(ks[5 + i], (512, 512)) for i in range(3)],
        "gcn_b": [w(ks[8 + i], (512,)) for i in range(3)],
        "read1_w": w(ks[11], (512, 1024)),
        "read1_b": w(ks[12], (1024,)),
        "read2_w": w(ks[13], (1024, out_dim)),
        "read2_b": w(ks[14], (out_dim,)),
        "weight1": jnp.array([0.6, 0.4], dtype=jnp.float32),
    }


def prepare_params(params, out_dim):
    """Cast matmul operands to bf16, stack GCN layers, pad for lane density."""
    kaa_pad = 128                                   # 96 -> 128 contraction dim
    out_pad = max(128, ((out_dim + 127) // 128) * 128)
    emb = jnp.pad(params["emb"], ((0, 0), (0, kaa_pad - params["emb"].shape[1])))
    waa = jnp.pad(params["proj_aa_w"], ((0, kaa_pad - params["proj_aa_w"].shape[0]), (0, 0)))
    r2w = jnp.pad(params["read2_w"], ((0, 0), (0, out_pad - out_dim)))
    r2b = jnp.pad(params["read2_b"], ((0, out_pad - out_dim),))
    return {
        "emb": emb.astype(jnp.bfloat16),                         # [21, 128]
        "proj_aa_w": waa.astype(jnp.bfloat16),                   # [128, 512]
        "proj_aa_b": params["proj_aa_b"],
        "proj_esm_w": params["proj_esm_w"].astype(jnp.bfloat16),  # [1280, 512]
        "proj_esm_b": params["proj_esm_b"],
        "gcn_w": jnp.stack(params["gcn_w"]).astype(jnp.bfloat16),  # [3, 512, 512]
        "gcn_b": jnp.stack(params["gcn_b"])[:, None, :],           # [3, 1, 512] f32
        "read1_w": params["read1_w"].astype(jnp.bfloat16),
        "read1_b": params["read1_b"],
        "read2_w": r2w.astype(jnp.bfloat16),                       # [1024, out_pad]
        "read2_b": r2b,
        "weight1": params["weight1"],
        "out_dim": out_dim,
    }


def gcn_norm_dense(edge_index, num_nodes):
    """Dense normalized adjacency matching PyG GCNConv (add self loops, sym norm).
    Note: assumes edge_index has no explicit self loops (as in PyG default usage)."""
    src, dst = edge_index[0], edge_index[1]
    a = jnp.zeros((num_nodes, num_nodes), dtype=jnp.float32)
    a = a.at[dst, src].set(1.0)                       # message src -> dst
    a = a + jnp.eye(num_nodes, dtype=jnp.float32)     # self loops
    deg = a.sum(axis=1)
    dinv = 1.0 / jnp.sqrt(jnp.maximum(deg, 1e-12))
    return dinv[:, None] * a * dinv[None, :]


def agcn_forward(prep, native_x, x_esm_raw, a_norm, pool_mat):
    out_dim = prep["out_dim"]
    # embedding lookup (glue); features already zero-padded 96 -> 128
    x_aa_emb = prep["emb"][native_x]                                   # [N, 128] bf16
    # fused: x_esm_pre, x = relu(proj_aa + x_esm_pre), x_esm = relu(x_esm_pre)
    # both streams land in one [2, N, 512] bf16 slab (no wrapper-side stack copy)
    x_both = fused_projection(
        x_aa_emb, prep["proj_aa_w"], prep["proj_aa_b"],
        x_esm_raw.astype(jnp.bfloat16), prep["proj_esm_w"], prep["proj_esm_b"])
    # both feature streams through the same fused GCN+pool kernel (shared weights)
    g_both = gcn_stack_and_pool(
        x_both, a_norm.astype(jnp.bfloat16), prep["gcn_w"], prep["gcn_b"],
        pool_mat.astype(jnp.bfloat16))                                 # [2, G, 512]
    # fused weight1 mix + readout MLP + sigmoid (lane-padded output)
    y_pad = fused_readout(prep["weight1"], g_both,
                          prep["read1_w"], prep["read1_b"],
                          prep["read2_w"], prep["read2_b"])            # [G, out_pad]
    return y_pad[:, :out_dim]


# ---------------------------------------------------------------------------
# Main
# ---------------------------------------------------------------------------
if __name__ == "__main__":
    key = jax.random.PRNGKey(0)
    k_param, k_nat, k_x, k_e = jax.random.split(key, 4)

    N = 16           # total nodes (two graphs of 8 nodes each)
    G = 2            # number of graphs
    OUT_DIM = 8

    params = init_params(k_param, OUT_DIM)
    prep = prepare_params(params, OUT_DIM)

    # synthetic graph data (deterministic)
    native_x = jax.random.randint(k_nat, (N,), 0, 21)                   # amino-acid ids
    x_esm_raw = jax.random.normal(k_x, (N, 1280), dtype=jnp.float32)    # ESM embeddings
    # ring edges within each 8-node graph, both directions
    idx = jnp.arange(8)
    e_src = jnp.concatenate([idx, (idx + 1) % 8, idx + 8, (idx + 1) % 8 + 8])
    e_dst = jnp.concatenate([(idx + 1) % 8, idx, (idx + 1) % 8 + 8, idx + 8])
    edge_index = jnp.stack([e_src, e_dst])                              # [2, 32]
    batch = jnp.concatenate([jnp.zeros(8, jnp.int32), jnp.ones(8, jnp.int32)])

    a_norm = gcn_norm_dense(edge_index, N)                              # [N, N]
    onehot = (batch[None, :] == jnp.arange(G)[:, None]).astype(jnp.float32)
    pool_mat = onehot / jnp.maximum(onehot.sum(axis=1, keepdims=True), 1.0)  # [G, N]

    y = agcn_forward(prep, native_x, x_esm_raw, a_norm, pool_mat)
    y = jax.block_until_ready(y)
    assert y.shape == (G, OUT_DIM)
    assert bool(jnp.all(jnp.isfinite(y)))
    assert bool(jnp.all((y >= 0.0) & (y <= 1.0)))  # sigmoid output range
    print("KERNEL_OK")
</pallas_src>

<mosaic_0001>
module attributes {stable_mosaic.version = 11 : i64} {
  func.func @_proj_kernel(%arg0: i32, %arg1: memref<16x128xbf16, #tpu.memory_space<vmem>>, %arg2: memref<128x512xbf16, #tpu.memory_space<vmem>>, %arg3: memref<1x512xf32, #tpu.memory_space<vmem>>, %arg4: memref<16x1280xbf16, #tpu.memory_space<vmem>>, %arg5: memref<1280x512xbf16, #tpu.memory_space<vmem>>, %arg6: memref<1x512xf32, #tpu.memory_space<vmem>>, %arg7: memref<2x16x512xbf16, #tpu.memory_space<vmem>>) attributes {dimension_semantics = [#tpu.dimension_semantics<parallel>], iteration_bounds = array<i64: 1>, scalar_prefetch = 0 : i64, scratch_operands = 0 : i64, tpu.core_type = #tpu.core_type<tc>, window_params = [{transform_indices = @transform_0, window_bounds = array<i64: 16, 128>}, {pipeline_mode = #tpu.pipeline_mode<synchronous>, transform_indices = @transform_1, window_bounds = array<i64: 128, 512>}, {pipeline_mode = #tpu.pipeline_mode<synchronous>, transform_indices = @transform_2, window_bounds = array<i64: 1, 512>}, {transform_indices = @transform_3, window_bounds = array<i64: 16, 1280>}, {pipeline_mode = #tpu.pipeline_mode<synchronous>, transform_indices = @transform_4, window_bounds = array<i64: 1280, 512>}, {pipeline_mode = #tpu.pipeline_mode<synchronous>, transform_indices = @transform_5, window_bounds = array<i64: 1, 512>}, {transform_indices = @transform_6, window_bounds = array<i64: 2, 16, 512>}]} {
    %c0 = arith.constant 0 : index
    %c0_0 = arith.constant 0 : index
    %0 = vector.load %arg4[%c0, %c0_0] : memref<16x1280xbf16, #tpu.memory_space<vmem>>, vector<16x1280xbf16>
    %c0_1 = arith.constant 0 : index
    %c0_2 = arith.constant 0 : index
    %1 = vector.load %arg5[%c0_1, %c0_2] : memref<1280x512xbf16, #tpu.memory_space<vmem>>, vector<1280x512xbf16>
    %cst = arith.constant dense<0.000000e+00> : vector<16x512xf32>
    %2 = tpu.matmul %0, %1, %cst {dimension_numbers = #tpu.dot_dimension_numbers<[1], [0], [0], [1], [0, 0, 1, 1], [], []>} : vector<16x1280xbf16>, vector<1280x512xbf16>, vector<16x512xf32> -> vector<16x512xf32>
    %c0_3 = arith.constant 0 : index
    %c0_4 = arith.constant 0 : index
    %3 = vector.load %arg6[%c0_3, %c0_4] : memref<1x512xf32, #tpu.memory_space<vmem>>, vector<1x512xf32>
    %4 = vector.broadcast %3 : vector<1x512xf32> to vector<16x512xf32>
    %5 = arith.addf %2, %4 : vector<16x512xf32>
    %c0_5 = arith.constant 0 : index
    %c0_6 = arith.constant 0 : index
    %6 = vector.load %arg1[%c0_5, %c0_6] : memref<16x128xbf16, #tpu.memory_space<vmem>>, vector<16x128xbf16>
    %c0_7 = arith.constant 0 : index
    %c0_8 = arith.constant 0 : index
    %7 = vector.load %arg2[%c0_7, %c0_8] : memref<128x512xbf16, #tpu.memory_space<vmem>>, vector<128x512xbf16>
    %cst_9 = arith.constant dense<0.000000e+00> : vector<16x512xf32>
    %8 = tpu.matmul %6, %7, %cst_9 {dimension_numbers = #tpu.dot_dimension_numbers<[1], [0], [0], [1], [0, 0, 1, 1], [], []>} : vector<16x128xbf16>, vector<128x512xbf16>, vector<16x512xf32> -> vector<16x512xf32>
    %c0_10 = arith.constant 0 : index
    %c0_11 = arith.constant 0 : index
    %9 = vector.load %arg3[%c0_10, %c0_11] : memref<1x512xf32, #tpu.memory_space<vmem>>, vector<1x512xf32>
    %10 = vector.broadcast %9 : vector<1x512xf32> to vector<16x512xf32>
    %11 = arith.addf %8, %10 : vector<16x512xf32>
    %12 = arith.addf %11, %5 : vector<16x512xf32>
    %cst_12 = arith.constant 0.000000e+00 : f32
    %13 = vector.broadcast %cst_12 : f32 to vector<16x512xf32>
    %14 = arith.maximumf %12, %13 : vector<16x512xf32>
    %15 = arith.truncf %14 : vector<16x512xf32> to vector<16x512xbf16>
    %c0_13 = arith.constant 0 : index
    %c0_14 = arith.constant 0 : index
    %c0_15 = arith.constant 0 : index
    %16 = vector.load %arg7[%c0_13, %c0_14, %c0_15] : memref<2x16x512xbf16, #tpu.memory_space<vmem>>, vector<1x16x512xbf16>
    %17 = vector.shape_cast %16 : vector<1x16x512xbf16> to vector<16x512xbf16>
    %18 = vector.shape_cast %15 : vector<16x512xbf16> to vector<1x16x512xbf16>
    tpu.vector_store %arg7[%c0_13, %c0_14, %c0_15], %18 {strides = array<i32>} : memref<2x16x512xbf16, #tpu.memory_space<vmem>>, vector<1x16x512xbf16>,
    %cst_16 = arith.constant 0.000000e+00 : f32
    %19 = vector.broadcast %cst_16 : f32 to vector<16x512xf32>
    %20 = arith.maximumf %5, %19 : vector<16x512xf32>
    %21 = arith.truncf %20 : vector<16x512xf32> to vector<16x512xbf16>
    %c1 = arith.constant 1 : index
    %c0_17 = arith.constant 0 : index
    %c0_18 = arith.constant 0 : index
    %22 = vector.load %arg7[%c1, %c0_17, %c0_18] : memref<2x16x512xbf16, #tpu.memory_space<vmem>>, vector<1x16x512xbf16>
    %23 = vector.shape_cast %22 : vector<1x16x512xbf16> to vector<16x512xbf16>
    %24 = vector.shape_cast %21 : vector<16x512xbf16> to vector<1x16x512xbf16>
    tpu.vector_store %arg7[%c1, %c0_17, %c0_18], %24 {strides = array<i32>} : memref<2x16x512xbf16, #tpu.memory_space<vmem>>, vector<1x16x512xbf16>,
    return
  }
  func.func @transform_0(%arg0: i32) -> (i32, i32) {
    %c0_i32 = arith.constant 0 : i32
    %c0_i32_0 = arith.constant 0 : i32
    return %arg0, %c0_i32 : i32, i32
  }
  func.func @transform_1(%arg0: i32) -> (i32, i32) {
    %c0_i32 = arith.constant 0 : i32
    %c0_i32_0 = arith.constant 0 : i32
    %c0_i32_1 = arith.constant 0 : i32
    return %c0_i32, %c0_i32_0 : i32, i32
  }
  func.func @transform_2(%arg0: i32) -> (i32, i32) {
    %c0_i32 = arith.constant 0 : i32
    %c0_i32_0 = arith.constant 0 : i32
    %c0_i32_1 = arith.constant 0 : i32
    return %c0_i32, %c0_i32_0 : i32, i32
  }
  func.func @transform_3(%arg0: i32) -> (i32, i32) {
    %c0_i32 = arith.constant 0 : i32
    %c0_i32_0 = arith.constant 0 : i32
    return %arg0, %c0_i32 : i32, i32
  }
  func.func @transform_4(%arg0: i32) -> (i32, i32) {
    %c0_i32 = arith.constant 0 : i32
    %c0_i32_0 = arith.constant 0 : i32
    %c0_i32_1 = arith.constant 0 : i32
    return %c0_i32, %c0_i32_0 : i32, i32
  }
  func.func @transform_5(%arg0: i32) -> (i32, i32) {
    %c0_i32 = arith.constant 0 : i32
    %c0_i32_0 = arith.constant 0 : i32
    %c0_i32_1 = arith.constant 0 : i32
    return %c0_i32, %c0_i32_0 : i32, i32
  }
  func.func @transform_6(%arg0: i32) -> (i32, i32, i32) {
    %c0_i32 = arith.constant 0 : i32
    %c0_i32_0 = arith.constant 0 : i32
    %c0_i32_1 = arith.constant 0 : i32
    return %c0_i32, %arg0, %c0_i32_0 : i32, i32, i32
  }
}

</mosaic_0001>

<llo_original>
// kernel: tpu_custom_call.1
$region0: #{tpu_custom_call.1}
  #allocation0 [shape = 'u32[]', space=smem, size = 0x4, offset = 0x4, fixed_abs, tag = 'smem constant byte address 0x4 - core index']
  #allocation1 [shape = 'u32[144,128]{1,0:T(1,128)}', space=vmem, size = 0x12000, scoped, tag = 'internal scratch']
  %s0 = inlined_call_operand.hbm [shape: bf16[16,128], index: 0, kind: input, shape index: {}]
  %s1 = inlined_call_operand.hbm [shape: bf16[128,512], index: 1, kind: input, shape index: {}]
  %s2 = inlined_call_operand.hbm [shape: f32[1,512], index: 2, kind: input, shape index: {}]
  %s3 = inlined_call_operand.hbm [shape: bf16[16,1280], index: 3, kind: input, shape index: {}]
  %s4 = inlined_call_operand.hbm [shape: bf16[1280,512], index: 4, kind: input, shape index: {}]
  %s5 = inlined_call_operand.hbm [shape: f32[1,512], index: 5, kind: input, shape index: {}]
  %s6 = inlined_call_operand.hbm [shape: bf16[2,16,512], index: 6, kind: output, shape index: {}]
  %s7 = sld [smem:[#allocation0]]
  $region58: #{tpu_custom_call.1} parent=0
    _
  %s9 = ssub.s32 1, %s7
  %s10 = scalar_select 0, %s9, %s7
  $region1: #{tpu_custom_call.1} parent=0
    #allocation2 [shape = 'u8[4096]{0}', space=vmem, size = 0x1000, scoped, tag = 'input window, operand 0, single buffered']
    #allocation3 [shape = 's32[1]{0}', space=sflag, size = 0x4, scoped, tag = 'scoped memory for tpu_custom_call.1']
    #allocation4 [shape = 's32[1]{0}', space=sflag, size = 0x4, scoped, tag = 'scoped memory for tpu_custom_call.1']
    #allocation5 [shape = 'u8[131072]{0}', space=vmem, size = 0x20000, scoped, tag = 'input window, operand 1, single buffered']
    #allocation6 [shape = 's32[1]{0}', space=sflag, size = 0x4, scoped, tag = 'scoped memory for tpu_custom_call.1']
    #allocation7 [shape = 'u8[2048]{0}', space=vmem, size = 0x800, scoped, tag = 'input window, operand 2, single buffered']
    #allocation8 [shape = 'u8[40960]{0}', space=vmem, size = 0xa000, scoped, tag = 'input window, operand 3, single buffered']
    #allocation9 [shape = 's32[1]{0}', space=sflag, size = 0x4, scoped, tag = 'scoped memory for tpu_custom_call.1']
    #allocation10 [shape = 'u8[1310720]{0}', space=vmem, size = 0x140000, scoped, tag = 'input window, operand 4, single buffered']
    #allocation11 [shape = 'u8[2048]{0}', space=vmem, size = 0x800, scoped, tag = 'input window, operand 5, single buffered']
    #allocation12 [shape = 's32[1]{0}', space=sflag, size = 0x4, scoped, tag = 'scoped memory for tpu_custom_call.1']
    #allocation13 [shape = 'u8[32768]{0}', space=vmem, size = 0x8000, scoped, tag = 'output window, operand 0, single buffered']
    %11 = vsyncpa [#allocation3], 0
    %12 = vsyncpa [#allocation6], 0
    %13 = vsyncpa [#allocation9], 0
    %14 = vsyncpa [#allocation12], 0
    %15 = vsyncpa [#allocation4], 0
    // Predicated region
    $region2: #{tpu_custom_call.1} parent=1 // pred_check
      _
    $region3: #{tpu_custom_call.1} parent=1 // pred_check_branch
      %17 = sbr.rel (0) target = $region5
    $region4: #{tpu_custom_call.1} parent=1 // pred_region
      %s19 = ssub.s32 128, 128
      %20 = vsyncadd [#allocation3], %s19
      %s21 = sshll.u32 [#allocation2], 4
      %s22 = int_to_ptr.vmem [resolvable:$true] %s21
      %27 = dma.hbm_to_vmem [thread:$0]  %s0, 128, %s22, [#allocation3], 64, 64, 4
    $region5: #{tpu_custom_call.1} parent=1 // pred_fallthru
      _
    // Predicated region
    $region6: #{tpu_custom_call.1} parent=1 // pred_check
      _
    $region7: #{tpu_custom_call.1} parent=1 // pred_check_branch
      %29 = sbr.rel (0) target = $region9
    $region8: #{tpu_custom_call.1} parent=1 // pred_region
      %s31 = ssub.s32 4096, 4096
      %32 = vsyncadd [#allocation6], %s31
      %s33 = sshll.u32 [#allocation5], 4
      %s34 = int_to_ptr.vmem [resolvable:$true] %s33
      %39 = dma.hbm_to_vmem [thread:$0]  %s1, 4096, %s34, [#allocation6], 256, 256, 16
    $region9: #{tpu_custom_call.1} parent=1 // pred_fallthru
      _
    // Predicated region
    $region10: #{tpu_custom_call.1} parent=1 // pred_check
      _
    $region11: #{tpu_custom_call.1} parent=1 // pred_check_branch
      %41 = sbr.rel (0) target = $region13
    $region12: #{tpu_custom_call.1} parent=1 // pred_region
      %s43 = ssub.s32 64, 64
      %44 = vsyncadd [#allocation6], %s43
      %s46 = sshll.u32 [#allocation7], 4
      %s47 = int_to_ptr.vmem [resolvable:$true] %s46
      %49 = dma.hbm_to_vmem [thread:$0]  %s2, 64, %s47, [#allocation6]
    $region13: #{tpu_custom_call.1} parent=1 // pred_fallthru
      _
    // Predicated region
    $region14: #{tpu_custom_call.1} parent=1 // pred_check
      _
    $region15: #{tpu_custom_call.1} parent=1 // pred_check_branch
      %51 = sbr.rel (0) target = $region17
    $region16: #{tpu_custom_call.1} parent=1 // pred_region
      %s53 = ssub.s32 1280, 1280
      %54 = vsyncadd [#allocation9], %s53
      %s55 = sshll.u32 [#allocation8], 4
      %s56 = int_to_ptr.vmem [resolvable:$true] %s55
      %61 = dma.hbm_to_vmem [thread:$0]  %s3, 1280, %s56, [#allocation9], 640, 640, 40
    $region17: #{tpu_custom_call.1} parent=1 // pred_fallthru
      _
    // Predicated region
    $region18: #{tpu_custom_call.1} parent=1 // pred_check
      _
    $region19: #{tpu_custom_call.1} parent=1 // pred_check_branch
      %63 = sbr.rel (0) target = $region21
    $region20: #{tpu_custom_call.1} parent=1 // pred_region
      %s65 = ssub.s32 40960, 40960
      %66 = vsyncadd [#allocation9], %s65
      %s67 = sshll.u32 [#allocation10], 4
      %s68 = int_to_ptr.vmem [resolvable:$true] %s67
      %73 = dma.hbm_to_vmem [thread:$0]  %s4, 40960, %s68, [#allocation9], 256, 256, 16
    $region21: #{tpu_custom_call.1} parent=1 // pred_fallthru
      _
    // Predicated region
    $region22: #{tpu_custom_call.1} parent=1 // pred_check
      _
    $region23: #{tpu_custom_call.1} parent=1 // pred_check_branch
      %75 = sbr.rel (0) target = $region25
    $region24: #{tpu_custom_call.1} parent=1 // pred_region
      %s77 = ssub.s32 64, 64
      %78 = vsyncadd [#allocation12], %s77
      %s80 = sshll.u32 [#allocation11], 4
      %s81 = int_to_ptr.vmem [resolvable:$true] %s80
      %83 = dma.hbm_to_vmem [thread:$0]  %s5, 64, %s81, [#allocation12]
    $region25: #{tpu_custom_call.1} parent=1 // pred_fallthru
      _
    // Predicated region
    $region26: #{tpu_custom_call.1} parent=1 // pred_check
      _
    $region27: #{tpu_custom_call.1} parent=1 // pred_check_branch
      %85 = sbr.rel (0) target = $region29
    $region28: #{tpu_custom_call.1} parent=1 // pred_region
      %86 = dma.done [#allocation3], 128
    $region29: #{tpu_custom_call.1} parent=1 // pred_fallthru
      _
    // Predicated region
    $region30: #{tpu_custom_call.1} parent=1 // pred_check
      _
    $region31: #{tpu_custom_call.1} parent=1 // pred_check_branch
      %88 = sbr.rel (0) target = $region33
    $region32: #{tpu_custom_call.1} parent=1 // pred_region
      %89 = dma.done [#allocation6], 4096
    $region33: #{tpu_custom_call.1} parent=1 // pred_fallthru
      _
    // Predicated region
    $region34: #{tpu_custom_call.1} parent=1 // pred_check
      _
    $region35: #{tpu_custom_call.1} parent=1 // pred_check_branch
      %91 = sbr.rel (0) target = $region37
    $region36: #{tpu_custom_call.1} parent=1 // pred_region
      %92 = dma.done [#allocation6], 64
    $region37: #{tpu_custom_call.1} parent=1 // pred_fallthru
      _
    // Predicated region
    $region38: #{tpu_custom_call.1} parent=1 // pred_check
      _
    $region39: #{tpu_custom_call.1} parent=1 // pred_check_branch
      %94 = sbr.rel (0) target = $region41
    $region40: #{tpu_custom_call.1} parent=1 // pred_region
      %95 = dma.done [#allocation9], 1280
    $region41: #{tpu_custom_call.1} parent=1 // pred_fallthru
      _
    // Predicated region
    $region42: #{tpu_custom_call.1} parent=1 // pred_check
      _
    $region43: #{tpu_custom_call.1} parent=1 // pred_check_branch
      %97 = sbr.rel (0) target = $region45
    $region44: #{tpu_custom_call.1} parent=1 // pred_region
      %98 = dma.done [#allocation9], 40960
    $region45: #{tpu_custom_call.1} parent=1 // pred_fallthru
      _
    // Predicated region
    $region46: #{tpu_custom_call.1} parent=1 // pred_check
      _
    $region47: #{tpu_custom_call.1} parent=1 // pred_check_branch
      %100 = sbr.rel (0) target = $region49
    $region48: #{tpu_custom_call.1} parent=1 // pred_region
      %101 = dma.done [#allocation12], 64
    $region49: #{tpu_custom_call.1} parent=1 // pred_fallthru
      _
    %v103 = vld [vmem:[#allocation8] sm:$0xff]
    %v104 = vld [vmem:[#allocation8 + $0x8] sm:$0xff]
    %v105 = vld [vmem:[#allocation8 + $0x10] sm:$0xff]
    %v106 = vld [vmem:[#allocation8 + $0x18] sm:$0xff]
    %v107 = vld [vmem:[#allocation8 + $0x20] sm:$0xff]
    %v108 = vld [vmem:[#allocation8 + $0x28] sm:$0xff]
    %v109 = vld [vmem:[#allocation8 + $0x30] sm:$0xff]
    %v110 = vld [vmem:[#allocation8 + $0x38] sm:$0xff]
    %v111 = vld [vmem:[#allocation8 + $0x40] sm:$0xff]
    %v112 = vld [vmem:[#allocation8 + $0x48] sm:$0xff]
    %v113 = vld [vmem:[#allocation10] sm:$0xff]
    %v114 = vld [vmem:[#allocation10 + $0x8] sm:$0xff]
    %v115 = vld [vmem:[#allocation10 + $0x10] sm:$0xff]
    %v116 = vld [vmem:[#allocation10 + $0x18] sm:$0xff]
    %v117 = vld [vmem:[#allocation10 + $0x20] sm:$0xff]
    %v118 = vld [vmem:[#allocation10 + $0x28] sm:$0xff]
    %v119 = vld [vmem:[#allocation10 + $0x30] sm:$0xff]
    %v120 = vld [vmem:[#allocation10 + $0x38] sm:$0xff]
    %v121 = vld [vmem:[#allocation10 + $0x40] sm:$0xff]
    %v122 = vld [vmem:[#allocation10 + $0x48] sm:$0xff]
    %v123 = vld [vmem:[#allocation10 + $0x50] sm:$0xff]
    %v124 = vld [vmem:[#allocation10 + $0x58] sm:$0xff]
    %v125 = vld [vmem:[#allocation10 + $0x60] sm:$0xff]
    %v126 = vld [vmem:[#allocation10 + $0x68] sm:$0xff]
    %v127 = vld [vmem:[#allocation10 + $0x70] sm:$0xff]
    %v128 = vld [vmem:[#allocation10 + $0x78] sm:$0xff]
    %v129 = vld [vmem:[#allocation10 + $0x80] sm:$0xff]
    %v130 = vld [vmem:[#allocation10 + $0x88] sm:$0xff]
    %v131 = vld [vmem:[#allocation10 + $0x90] sm:$0xff]
    %v132 = vld [vmem:[#allocation10 + $0x98] sm:$0xff]
    %v133 = vld [vmem:[#allocation10 + $0xa0] sm:$0xff]
    %v134 = vld [vmem:[#allocation10 + $0xa8] sm:$0xff]
    %v135 = vld [vmem:[#allocation10 + $0xb0] sm:$0xff]
    %v136 = vld [vmem:[#allocation10 + $0xb8] sm:$0xff]
    %v137 = vld [vmem:[#allocation10 + $0xc0] sm:$0xff]
    %v138 = vld [vmem:[#allocation10 + $0xc8] sm:$0xff]
    %v139 = vld [vmem:[#allocation10 + $0xd0] sm:$0xff]
    %v140 = vld [vmem:[#allocation10 + $0xd8] sm:$0xff]
    %v141 = vld [vmem:[#allocation10 + $0xe0] sm:$0xff]
    %v142 = vld [vmem:[#allocation10 + $0xe8] sm:$0xff]
    %v143 = vld [vmem:[#allocation10 + $0xf0] sm:$0xff]
    %v144 = vld [vmem:[#allocation10 + $0xf8] sm:$0xff]
    %v145 = vld [vmem:[#allocation10 + $0x100] sm:$0xff]
    %v146 = vld [vmem:[#allocation10 + $0x108] sm:$0xff]
    %v147 = vld [vmem:[#allocation10 + $0x110] sm:$0xff]
    %v148 = vld [vmem:[#allocation10 + $0x118] sm:$0xff]
    %v149 = vld [vmem:[#allocation10 + $0x120] sm:$0xff]
    %v150 = vld [vmem:[#allocation10 + $0x128] sm:$0xff]
    %v151 = vld [vmem:[#allocation10 + $0x130] sm:$0xff]
    %v152 = vld [vmem:[#allocation10 + $0x138] sm:$0xff]
    %v153 = vld [vmem:[#allocation10 + $0x140] sm:$0xff]
    %v154 = vld [vmem:[#allocation10 + $0x148] sm:$0xff]
    %v155 = vld [vmem:[#allocation10 + $0x150] sm:$0xff]
    %v156 = vld [vmem:[#allocation10 + $0x158] sm:$0xff]
    %v157 = vld [vmem:[#allocation10 + $0x160] sm:$0xff]
    %v158 = vld [vmem:[#allocation10 + $0x168] sm:$0xff]
    %v159 = vld [vmem:[#allocation10 + $0x170] sm:$0xff]
    %v160 = vld [vmem:[#allocation10 + $0x178] sm:$0xff]
    %v161 = vld [vmem:[#allocation10 + $0x180] sm:$0xff]
    %v162 = vld [vmem:[#allocation10 + $0x188] sm:$0xff]
    %v163 = vld [vmem:[#allocation10 + $0x190] sm:$0xff]
    %v164 = vld [vmem:[#allocation10 + $0x198] sm:$0xff]
    %v165 = vld [vmem:[#allocation10 + $0x1a0] sm:$0xff]
    %v166 = vld [vmem:[#allocation10 + $0x1a8] sm:$0xff]
    %v167 = vld [vmem:[#allocation10 + $0x1b0] sm:$0xff]
    %v168 = vld [vmem:[#allocation10 + $0x1b8] sm:$0xff]
    %v169 = vld [vmem:[#allocation10 + $0x1c0] sm:$0xff]
    %v170 = vld [vmem:[#allocation10 + $0x1c8] sm:$0xff]
    %v171 = vld [vmem:[#allocation10 + $0x1d0] sm:$0xff]
    %v172 = vld [vmem:[#allocation10 + $0x1d8] sm:$0xff]
    %v173 = vld [vmem:[#allocation10 + $0x1e0] sm:$0xff]
    %v174 = vld [vmem:[#allocation10 + $0x1e8] sm:$0xff]
    %v175 = vld [vmem:[#allocation10 + $0x1f0] sm:$0xff]
    %v176 = vld [vmem:[#allocation10 + $0x1f8] sm:$0xff]
    %v177 = vld [vmem:[#allocation10 + $0x200] sm:$0xff]
    %v178 = vld [vmem:[#allocation10 + $0x208] sm:$0xff]
    %v179 = vld [vmem:[#allocation10 + $0x210] sm:$0xff]
    %v180 = vld [vmem:[#allocation10 + $0x218] sm:$0xff]
    %v181 = vld [vmem:[#allocation10 + $0x220] sm:$0xff]
    %v182 = vld [vmem:[#allocation10 + $0x228] sm:$0xff]
    %v183 = vld [vmem:[#allocation10 + $0x230] sm:$0xff]
    %v184 = vld [vmem:[#allocation10 + $0x238] sm:$0xff]
    %v185 = vld [vmem:[#allocation10 + $0x240] sm:$0xff]
    %v186 = vld [vmem:[#allocation10 + $0x248] sm:$0xff]
    %v187 = vld [vmem:[#allocation10 + $0x250] sm:$0xff]
    %v188 = vld [vmem:[#allocation10 + $0x258] sm:$0xff]
    %v189 = vld [vmem:[#allocation10 + $0x260] sm:$0xff]
    %v190 = vld [vmem:[#allocation10 + $0x268] sm:$0xff]
    %v191 = vld [vmem:[#allocation10 + $0x270] sm:$0xff]
    %v192 = vld [vmem:[#allocation10 + $0x278] sm:$0xff]
    %v193 = vld [vmem:[#allocation10 + $0x280] sm:$0xff]
    %v194 = vld [vmem:[#allocation10 + $0x288] sm:$0xff]
    %v195 = vld [vmem:[#allocation10 + $0x290] sm:$0xff]
    %v196 = vld [vmem:[#allocation10 + $0x298] sm:$0xff]
    %v197 = vld [vmem:[#allocation10 + $0x2a0] sm:$0xff]
    %v198 = vld [vmem:[#allocation10 + $0x2a8] sm:$0xff]
    %v199 = vld [vmem:[#allocation10 + $0x2b0] sm:$0xff]
    %v200 = vld [vmem:[#allocation10 + $0x2b8] sm:$0xff]
    %v201 = vld [vmem:[#allocation10 + $0x2c0] sm:$0xff]
    %v202 = vld [vmem:[#allocation10 + $0x2c8] sm:$0xff]
    %v203 = vld [vmem:[#allocation10 + $0x2d0] sm:$0xff]
    %v204 = vld [vmem:[#allocation10 + $0x2d8] sm:$0xff]
    %v205 = vld [vmem:[#allocation10 + $0x2e0] sm:$0xff]
    %v206 = vld [vmem:[#allocation10 + $0x2e8] sm:$0xff]
    %v207 = vld [vmem:[#allocation10 + $0x2f0] sm:$0xff]
    %v208 = vld [vmem:[#allocation10 + $0x2f8] sm:$0xff]
    %v209 = vld [vmem:[#allocation10 + $0x300] sm:$0xff]
    %v210 = vld [vmem:[#allocation10 + $0x308] sm:$0xff]
    %v211 = vld [vmem:[#allocation10 + $0x310] sm:$0xff]
    %v212 = vld [vmem:[#allocation10 + $0x318] sm:$0xff]
    %v213 = vld [vmem:[#allocation10 + $0x320] sm:$0xff]
    %v214 = vld [vmem:[#allocation10 + $0x328] sm:$0xff]
    %v215 = vld [vmem:[#allocation10 + $0x330] sm:$0xff]
    %v216 = vld [vmem:[#allocation10 + $0x338] sm:$0xff]
    %v217 = vld [vmem:[#allocation10 + $0x340] sm:$0xff]
    %v218 = vld [vmem:[#allocation10 + $0x348] sm:$0xff]
    %v219 = vld [vmem:[#allocation10 + $0x350] sm:$0xff]
    %v220 = vld [vmem:[#allocation10 + $0x358] sm:$0xff]
    %v221 = vld [vmem:[#allocation10 + $0x360] sm:$0xff]
    %v222 = vld [vmem:[#allocation10 + $0x368] sm:$0xff]
    %v223 = vld [vmem:[#allocation10 + $0x370] sm:$0xff]
    %v224 = vld [vmem:[#allocation10 + $0x378] sm:$0xff]
    %v225 = vld [vmem:[#allocation10 + $0x380] sm:$0xff]
    %v226 = vld [vmem:[#allocation10 + $0x388] sm:$0xff]
    %v227 = vld [vmem:[#allocation10 + $0x390] sm:$0xff]
    %v228 = vld [vmem:[#allocation10 + $0x398] sm:$0xff]
    %v229 = vld [vmem:[#allocation10 + $0x3a0] sm:$0xff]
    %v230 = vld [vmem:[#allocation10 + $0x3a8] sm:$0xff]
    %v231 = vld [vmem:[#allocation10 + $0x3b0] sm:$0xff]
    %v232 = vld [vmem:[#allocation10 + $0x3b8] sm:$0xff]
    %v233 = vld [vmem:[#allocation10 + $0x3c0] sm:$0xff]
    %v234 = vld [vmem:[#allocation10 + $0x3c8] sm:$0xff]
    %v235 = vld [vmem:[#allocation10 + $0x3d0] sm:$0xff]
    %v236 = vld [vmem:[#allocation10 + $0x3d8] sm:$0xff]
    %v237 = vld [vmem:[#allocation10 + $0x3e0] sm:$0xff]
    %v238 = vld [vmem:[#allocation10 + $0x3e8] sm:$0xff]
    %v239 = vld [vmem:[#allocation10 + $0x3f0] sm:$0xff]
    %v240 = vld [vmem:[#allocation10 + $0x3f8] sm:$0xff]
    %v241 = vld [vmem:[#allocation10 + $0x400] sm:$0xff]
    %v242 = vld [vmem:[#allocation10 + $0x408] sm:$0xff]
    %v243 = vld [vmem:[#allocation10 + $0x410] sm:$0xff]
    %v244 = vld [vmem:[#allocation10 + $0x418] sm:$0xff]
    %v245 = vld [vmem:[#allocation10 + $0x420] sm:$0xff]
    %v246 = vld [vmem:[#allocation10 + $0x428] sm:$0xff]
    %v247 = vld [vmem:[#allocation10 + $0x430] sm:$0xff]
    %v248 = vld [vmem:[#allocation10 + $0x438] sm:$0xff]
    %v249 = vld [vmem:[#allocation10 + $0x440] sm:$0xff]
    %v250 = vld [vmem:[#allocation10 + $0x448] sm:$0xff]
    %v251 = vld [vmem:[#allocation10 + $0x450] sm:$0xff]
    %v252 = vld [vmem:[#allocation10 + $0x458] sm:$0xff]
    %v253 = vld [vmem:[#allocation10 + $0x460] sm:$0xff]
    %v254 = vld [vmem:[#allocation10 + $0x468] sm:$0xff]
    %v255 = vld [vmem:[#allocation10 + $0x470] sm:$0xff]
    %v256 = vld [vmem:[#allocation10 + $0x478] sm:$0xff]
    %v257 = vld [vmem:[#allocation10 + $0x480] sm:$0xff]
    %v258 = vld [vmem:[#allocation10 + $0x488] sm:$0xff]
    %v259 = vld [vmem:[#allocation10 + $0x490] sm:$0xff]
    %v260 = vld [vmem:[#allocation10 + $0x498] sm:$0xff]
    %v261 = vld [vmem:[#allocation10 + $0x4a0] sm:$0xff]
    %v262 = vld [vmem:[#allocation10 + $0x4a8] sm:$0xff]
    %v263 = vld [vmem:[#allocation10 + $0x4b0] sm:$0xff]
    %v264 = vld [vmem:[#allocation10 + $0x4b8] sm:$0xff]
    %v265 = vld [vmem:[#allocation10 + $0x4c0] sm:$0xff]
    %v266 = vld [vmem:[#allocation10 + $0x4c8] sm:$0xff]
    %v267 = vld [vmem:[#allocation10 + $0x4d0] sm:$0xff]
    %v268 = vld [vmem:[#allocation10 + $0x4d8] sm:$0xff]
    %v269 = vld [vmem:[#allocation10 + $0x4e0] sm:$0xff]
    %v270 = vld [vmem:[#allocation10 + $0x4e8] sm:$0xff]
    %v271 = vld [vmem:[#allocation10 + $0x4f0] sm:$0xff]
    %v272 = vld [vmem:[#allocation10 + $0x4f8] sm:$0xff]
    %v273 = vld [vmem:[#allocation10 + $0x500] sm:$0xff]
    %v274 = vld [vmem:[#allocation10 + $0x508] sm:$0xff]
    %v275 = vld [vmem:[#allocation10 + $0x510] sm:$0xff]
    %v276 = vld [vmem:[#allocation10 + $0x518] sm:$0xff]
    %v277 = vld [vmem:[#allocation10 + $0x520] sm:$0xff]
    %v278 = vld [vmem:[#allocation10 + $0x528] sm:$0xff]
    %v279 = vld [vmem:[#allocation10 + $0x530] sm:$0xff]
    %v280 = vld [vmem:[#allocation10 + $0x538] sm:$0xff]
    %v281 = vld [vmem:[#allocation10 + $0x540] sm:$0xff]
    %v282 = vld [vmem:[#allocation10 + $0x548] sm:$0xff]
    %v283 = vld [vmem:[#allocation10 + $0x550] sm:$0xff]
    %v284 = vld [vmem:[#allocation10 + $0x558] sm:$0xff]
    %v285 = vld [vmem:[#allocation10 + $0x560] sm:$0xff]
    %v286 = vld [vmem:[#allocation10 + $0x568] sm:$0xff]
    %v287 = vld [vmem:[#allocation10 + $0x570] sm:$0xff]
    %v288 = vld [vmem:[#allocation10 + $0x578] sm:$0xff]
    %v289 = vld [vmem:[#allocation10 + $0x580] sm:$0xff]
    %v290 = vld [vmem:[#allocation10 + $0x588] sm:$0xff]
    %v291 = vld [vmem:[#allocation10 + $0x590] sm:$0xff]
    %v292 = vld [vmem:[#allocation10 + $0x598] sm:$0xff]
    %v293 = vld [vmem:[#allocation10 + $0x5a0] sm:$0xff]
    %v294 = vld [vmem:[#allocation10 + $0x5a8] sm:$0xff]
    %v295 = vld [vmem:[#allocation10 + $0x5b0] sm:$0xff]
    %v296 = vld [vmem:[#allocation10 + $0x5b8] sm:$0xff]
    %v297 = vld [vmem:[#allocation10 + $0x5c0] sm:$0xff]
    %v298 = vld [vmem:[#allocation10 + $0x5c8] sm:$0xff]
    %v299 = vld [vmem:[#allocation10 + $0x5d0] sm:$0xff]
    %v300 = vld [vmem:[#allocation10 + $0x5d8] sm:$0xff]
    %v301 = vld [vmem:[#allocation10 + $0x5e0] sm:$0xff]
    %v302 = vld [vmem:[#allocation10 + $0x5e8] sm:$0xff]
    %v303 = vld [vmem:[#allocation10 + $0x5f0] sm:$0xff]
    %v304 = vld [vmem:[#allocation10 + $0x5f8] sm:$0xff]
    %v305 = vld [vmem:[#allocation10 + $0x600] sm:$0xff]
    %v306 = vld [vmem:[#allocation10 + $0x608] sm:$0xff]
    %v307 = vld [vmem:[#allocation10 + $0x610] sm:$0xff]
    %v308 = vld [vmem:[#allocation10 + $0x618] sm:$0xff]
    %v309 = vld [vmem:[#allocation10 + $0x620] sm:$0xff]
    %v310 = vld [vmem:[#allocation10 + $0x628] sm:$0xff]
    %v311 = vld [vmem:[#allocation10 + $0x630] sm:$0xff]
    %v312 = vld [vmem:[#allocation10 + $0x638] sm:$0xff]
    %v313 = vld [vmem:[#allocation10 + $0x640] sm:$0xff]
    %v314 = vld [vmem:[#allocation10 + $0x648] sm:$0xff]
    %v315 = vld [vmem:[#allocation10 + $0x650] sm:$0xff]
    %v316 = vld [vmem:[#allocation10 + $0x658] sm:$0xff]
    %v317 = vld [vmem:[#allocation10 + $0x660] sm:$0xff]
    %v318 = vld [vmem:[#allocation10 + $0x668] sm:$0xff]
    %v319 = vld [vmem:[#allocation10 + $0x670] sm:$0xff]
    %v320 = vld [vmem:[#allocation10 + $0x678] sm:$0xff]
    %v321 = vld [vmem:[#allocation10 + $0x680] sm:$0xff]
    %v322 = vld [vmem:[#allocation10 + $0x688] sm:$0xff]
    %v323 = vld [vmem:[#allocation10 + $0x690] sm:$0xff]
    %v324 = vld [vmem:[#allocation10 + $0x698] sm:$0xff]
    %v325 = vld [vmem:[#allocation10 + $0x6a0] sm:$0xff]
    %v326 = vld [vmem:[#allocation10 + $0x6a8] sm:$0xff]
    %v327 = vld [vmem:[#allocation10 + $0x6b0] sm:$0xff]
    %v328 = vld [vmem:[#allocation10 + $0x6b8] sm:$0xff]
    %v329 = vld [vmem:[#allocation10 + $0x6c0] sm:$0xff]
    %v330 = vld [vmem:[#allocation10 + $0x6c8] sm:$0xff]
    %v331 = vld [vmem:[#allocation10 + $0x6d0] sm:$0xff]
    %v332 = vld [vmem:[#allocation10 + $0x6d8] sm:$0xff]
    %v333 = vld [vmem:[#allocation10 + $0x6e0] sm:$0xff]
    %v334 = vld [vmem:[#allocation10 + $0x6e8] sm:$0xff]
    %v335 = vld [vmem:[#allocation10 + $0x6f0] sm:$0xff]
    %v336 = vld [vmem:[#allocation10 + $0x6f8] sm:$0xff]
    %v337 = vld [vmem:[#allocation10 + $0x700] sm:$0xff]
    %v338 = vld [vmem:[#allocation10 + $0x708] sm:$0xff]
    %v339 = vld [vmem:[#allocation10 + $0x710] sm:$0xff]
    %v340 = vld [vmem:[#allocation10 + $0x718] sm:$0xff]
    %v341 = vld [vmem:[#allocation10 + $0x720] sm:$0xff]
    %v342 = vld [vmem:[#allocation10 + $0x728] sm:$0xff]
    %v343 = vld [vmem:[#allocation10 + $0x730] sm:$0xff]
    %v344 = vld [vmem:[#allocation10 + $0x738] sm:$0xff]
    %v345 = vld [vmem:[#allocation10 + $0x740] sm:$0xff]
    %v346 = vld [vmem:[#allocation10 + $0x748] sm:$0xff]
    %v347 = vld [vmem:[#allocation10 + $0x750] sm:$0xff]
    %v348 = vld [vmem:[#allocation10 + $0x758] sm:$0xff]
    %v349 = vld [vmem:[#allocation10 + $0x760] sm:$0xff]
    %v350 = vld [vmem:[#allocation10 + $0x768] sm:$0xff]
    %v351 = vld [vmem:[#allocation10 + $0x770] sm:$0xff]
    %v352 = vld [vmem:[#allocation10 + $0x778] sm:$0xff]
    %v353 = vld [vmem:[#allocation10 + $0x780] sm:$0xff]
    %v354 = vld [vmem:[#allocation10 + $0x788] sm:$0xff]
    %v355 = vld [vmem:[#allocation10 + $0x790] sm:$0xff]
    %v356 = vld [vmem:[#allocation10 + $0x798] sm:$0xff]
    %v357 = vld [vmem:[#allocation10 + $0x7a0] sm:$0xff]
    %v358 = vld [vmem:[#allocation10 + $0x7a8] sm:$0xff]
    %v359 = vld [vmem:[#allocation10 + $0x7b0] sm:$0xff]
    %v360 = vld [vmem:[#allocation10 + $0x7b8] sm:$0xff]
    %v361 = vld [vmem:[#allocation10 + $0x7c0] sm:$0xff]
    %v362 = vld [vmem:[#allocation10 + $0x7c8] sm:$0xff]
    %v363 = vld [vmem:[#allocation10 + $0x7d0] sm:$0xff]
    %v364 = vld [vmem:[#allocation10 + $0x7d8] sm:$0xff]
    %v365 = vld [vmem:[#allocation10 + $0x7e0] sm:$0xff]
    %v366 = vld [vmem:[#allocation10 + $0x7e8] sm:$0xff]
    %v367 = vld [vmem:[#allocation10 + $0x7f0] sm:$0xff]
    %v368 = vld [vmem:[#allocation10 + $0x7f8] sm:$0xff]
    %v369 = vld [vmem:[#allocation10 + $0x800] sm:$0xff]
    %v370 = vld [vmem:[#allocation10 + $0x808] sm:$0xff]
    %v371 = vld [vmem:[#allocation10 + $0x810] sm:$0xff]
    %v372 = vld [vmem:[#allocation10 + $0x818] sm:$0xff]
    %v373 = vld [vmem:[#allocation10 + $0x820] sm:$0xff]
    %v374 = vld [vmem:[#allocation10 + $0x828] sm:$0xff]
    %v375 = vld [vmem:[#allocation10 + $0x830] sm:$0xff]
    %v376 = vld [vmem:[#allocation10 + $0x838] sm:$0xff]
    %v377 = vld [vmem:[#allocation10 + $0x840] sm:$0xff]
    %v378 = vld [vmem:[#allocation10 + $0x848] sm:$0xff]
    %v379 = vld [vmem:[#allocation10 + $0x850] sm:$0xff]
    %v380 = vld [vmem:[#allocation10 + $0x858] sm:$0xff]
    %v381 = vld [vmem:[#allocation10 + $0x860] sm:$0xff]
    %v382 = vld [vmem:[#allocation10 + $0x868] sm:$0xff]
    %v383 = vld [vmem:[#allocation10 + $0x870] sm:$0xff]
    %v384 = vld [vmem:[#allocation10 + $0x878] sm:$0xff]
    %v385 = vld [vmem:[#allocation10 + $0x880] sm:$0xff]
    %v386 = vld [vmem:[#allocation10 + $0x888] sm:$0xff]
    %v387 = vld [vmem:[#allocation10 + $0x890] sm:$0xff]
    %v388 = vld [vmem:[#allocation10 + $0x898] sm:$0xff]
    %v389 = vld [vmem:[#allocation10 + $0x8a0] sm:$0xff]
    %v390 = vld [vmem:[#allocation10 + $0x8a8] sm:$0xff]
    %v391 = vld [vmem:[#allocation10 + $0x8b0] sm:$0xff]
    %v392 = vld [vmem:[#allocation10 + $0x8b8] sm:$0xff]
    %v393 = vld [vmem:[#allocation10 + $0x8c0] sm:$0xff]
    %v394 = vld [vmem:[#allocation10 + $0x8c8] sm:$0xff]
    %v395 = vld [vmem:[#allocation10 + $0x8d0] sm:$0xff]
    %v396 = vld [vmem:[#allocation10 + $0x8d8] sm:$0xff]
    %v397 = vld [vmem:[#allocation10 + $0x8e0] sm:$0xff]
    %v398 = vld [vmem:[#allocation10 + $0x8e8] sm:$0xff]
    %v399 = vld [vmem:[#allocation10 + $0x8f0] sm:$0xff]
    %v400 = vld [vmem:[#allocation10 + $0x8f8] sm:$0xff]
    %v401 = vld [vmem:[#allocation10 + $0x900] sm:$0xff]
    %v402 = vld [vmem:[#allocation10 + $0x908] sm:$0xff]
    %v403 = vld [vmem:[#allocation10 + $0x910] sm:$0xff]
    %v404 = vld [vmem:[#allocation10 + $0x918] sm:$0xff]
    %v405 = vld [vmem:[#allocation10 + $0x920] sm:$0xff]
    %v406 = vld [vmem:[#allocation10 + $0x928] sm:$0xff]
    %v407 = vld [vmem:[#allocation10 + $0x930] sm:$0xff]
    %v408 = vld [vmem:[#allocation10 + $0x938] sm:$0xff]
    %v409 = vld [vmem:[#allocation10 + $0x940] sm:$0xff]
    %v410 = vld [vmem:[#allocation10 + $0x948] sm:$0xff]
    %v411 = vld [vmem:[#allocation10 + $0x950] sm:$0xff]
    %v412 = vld [vmem:[#allocation10 + $0x958] sm:$0xff]
    %v413 = vld [vmem:[#allocation10 + $0x960] sm:$0xff]
    %v414 = vld [vmem:[#allocation10 + $0x968] sm:$0xff]
    %v415 = vld [vmem:[#allocation10 + $0x970] sm:$0xff]
    %v416 = vld [vmem:[#allocation10 + $0x978] sm:$0xff]
    %v417 = vld [vmem:[#allocation10 + $0x980] sm:$0xff]
    %v418 = vld [vmem:[#allocation10 + $0x988] sm:$0xff]
    %v419 = vld [vmem:[#allocation10 + $0x990] sm:$0xff]
    %v420 = vld [vmem:[#allocation10 + $0x998] sm:$0xff]
    %v421 = vld [vmem:[#allocation10 + $0x9a0] sm:$0xff]
    %v422 = vld [vmem:[#allocation10 + $0x9a8] sm:$0xff]
    %v423 = vld [vmem:[#allocation10 + $0x9b0] sm:$0xff]
    %v424 = vld [vmem:[#allocation10 + $0x9b8] sm:$0xff]
    %v425 = vld [vmem:[#allocation10 + $0x9c0] sm:$0xff]
    %v426 = vld [vmem:[#allocation10 + $0x9c8] sm:$0xff]
    %v427 = vld [vmem:[#allocation10 + $0x9d0] sm:$0xff]
    %v428 = vld [vmem:[#allocation10 + $0x9d8] sm:$0xff]
    %v429 = vld [vmem:[#allocation10 + $0x9e0] sm:$0xff]
    %v430 = vld [vmem:[#allocation10 + $0x9e8] sm:$0xff]
    %v431 = vld [vmem:[#allocation10 + $0x9f0] sm:$0xff]
    %v432 = vld [vmem:[#allocation10 + $0x9f8] sm:$0xff]
    %v433 = vld [vmem:[#allocation11] sm:$0xf]
    %v435 = vlaneseq
    %v436 = vshrl.u32 %v435, 7
    %v437 = vsub.s32 0, %v436
    %v438 = vrot.slane %v433, %v437
    %v439 = vlaneseq
    %v440 = vshrl.u32 %v439, 7
    %v441 = vsub.s32 1, %v440
    %v442 = vrot.slane %v433, %v441
    %v443 = vlaneseq
    %v444 = vshrl.u32 %v443, 7
    %v445 = vsub.s32 2, %v444
    %v446 = vrot.slane %v433, %v445
    %v447 = vlaneseq
    %v448 = vshrl.u32 %v447, 7
    %v449 = vsub.s32 3, %v448
    %v450 = vrot.slane %v433, %v449
    %v465 = vunpack.c.l.b16 %v103
    %v466 = vunpack.c.h.b16 %v103
    %v467 = vunpack.c.l.b16 %v104
    %v468 = vunpack.c.h.b16 %v104
    %v469 = vunpack.c.l.b16 %v105
    %v470 = vunpack.c.h.b16 %v105
    %v471 = vunpack.c.l.b16 %v106
    %v472 = vunpack.c.h.b16 %v106
    %v473 = vunpack.c.l.b16 %v107
    %v474 = vunpack.c.h.b16 %v107
    %v475 = vunpack.c.l.b16 %v108
    %v476 = vunpack.c.h.b16 %v108
    %v477 = vunpack.c.l.b16 %v109
    %v478 = vunpack.c.h.b16 %v109
    %v479 = vunpack.c.l.b16 %v110
    %v480 = vunpack.c.h.b16 %v110
    %v481 = vunpack.c.l.b16 %v111
    %v482 = vunpack.c.h.b16 %v111
    %v483 = vunpack.c.l.b16 %v112
    %v484 = vunpack.c.h.b16 %v112
    %v485 = vpack.c.b16 %v475, %v465
    %v486 = vpack.c.b16 %v476, %v466
    %v487 = vpack.c.b16 %v477, %v467
    %v488 = vpack.c.b16 %v478, %v468
    %v489 = vpack.c.b16 %v479, %v469
    %v490 = vpack.c.b16 %v480, %v470
    %v491 = vpack.c.b16 %v481, %v471
    %v492 = vpack.c.b16 %v482, %v472
    %v493 = vpack.c.b16 %v483, %v473
    %v494 = vpack.c.b16 %v484, %v474
    %v825 = vunpack.c.l.b16 %v113
    %v826 = vunpack.c.h.b16 %v113
    %v827 = vunpack.c.l.b16 %v114
    %v828 = vunpack.c.h.b16 %v114
    %v829 = vunpack.c.l.b16 %v115
    %v830 = vunpack.c.h.b16 %v115
    %v831 = vunpack.c.l.b16 %v116
    %v832 = vunpack.c.h.b16 %v116
    %v833 = vunpack.c.l.b16 %v117
    %v834 = vunpack.c.h.b16 %v117
    %v835 = vunpack.c.l.b16 %v118
    %v836 = vunpack.c.h.b16 %v118
    %v837 = vunpack.c.l.b16 %v119
    %v838 = vunpack.c.h.b16 %v119
    %v839 = vunpack.c.l.b16 %v120
    %v840 = vunpack.c.h.b16 %v120
    %v841 = vunpack.c.l.b16 %v121
    %v842 = vunpack.c.h.b16 %v121
    %v843 = vunpack.c.l.b16 %v122
    %v844 = vunpack.c.h.b16 %v122
    %v845 = vunpack.c.l.b16 %v123
    %v846 = vunpack.c.h.b16 %v123
    %v847 = vunpack.c.l.b16 %v124
    %v848 = vunpack.c.h.b16 %v124
    %v849 = vunpack.c.l.b16 %v125
    %v850 = vunpack.c.h.b16 %v125
    %v851 = vunpack.c.l.b16 %v126
    %v852 = vunpack.c.h.b16 %v126
    %v853 = vunpack.c.l.b16 %v127
    %v854 = vunpack.c.h.b16 %v127
    %v855 = vunpack.c.l.b16 %v128
    %v856 = vunpack.c.h.b16 %v128
    %v857 = vunpack.c.l.b16 %v129
    %v858 = vunpack.c.h.b16 %v129
    %v859 = vunpack.c.l.b16 %v130
    %v860 = vunpack.c.h.b16 %v130
    %v861 = vunpack.c.l.b16 %v131
    %v862 = vunpack.c.h.b16 %v131
    %v863 = vunpack.c.l.b16 %v132
    %v864 = vunpack.c.h.b16 %v132
    %v865 = vunpack.c.l.b16 %v133
    %v866 = vunpack.c.h.b16 %v133
    %v867 = vunpack.c.l.b16 %v134
    %v868 = vunpack.c.h.b16 %v134
    %v869 = vunpack.c.l.b16 %v135
    %v870 = vunpack.c.h.b16 %v135
    %v871 = vunpack.c.l.b16 %v136
    %v872 = vunpack.c.h.b16 %v136
    %v873 = vunpack.c.l.b16 %v137
    %v874 = vunpack.c.h.b16 %v137
    %v875 = vunpack.c.l.b16 %v138
    %v876 = vunpack.c.h.b16 %v138
    %v877 = vunpack.c.l.b16 %v139
    %v878 = vunpack.c.h.b16 %v139
    %v879 = vunpack.c.l.b16 %v140
    %v880 = vunpack.c.h.b16 %v140
    %v881 = vunpack.c.l.b16 %v141
    %v882 = vunpack.c.h.b16 %v141
    %v883 = vunpack.c.l.b16 %v142
    %v884 = vunpack.c.h.b16 %v142
    %v885 = vunpack.c.l.b16 %v143
    %v886 = vunpack.c.h.b16 %v143
    %v887 = vunpack.c.l.b16 %v144
    %v888 = vunpack.c.h.b16 %v144
    %v889 = vunpack.c.l.b16 %v145
    %v890 = vunpack.c.h.b16 %v145
    %v891 = vunpack.c.l.b16 %v146
    %v892 = vunpack.c.h.b16 %v146
    %v893 = vunpack.c.l.b16 %v147
    %v894 = vunpack.c.h.b16 %v147
    %v895 = vunpack.c.l.b16 %v148
    %v896 = vunpack.c.h.b16 %v148
    %v897 = vunpack.c.l.b16 %v149
    %v898 = vunpack.c.h.b16 %v149
    %v899 = vunpack.c.l.b16 %v150
    %v900 = vunpack.c.h.b16 %v150
    %v901 = vunpack.c.l.b16 %v151
    %v902 = vunpack.c.h.b16 %v151
    %v903 = vunpack.c.l.b16 %v152
    %v904 = vunpack.c.h.b16 %v152
    %v905 = vunpack.c.l.b16 %v153
    %v906 = vunpack.c.h.b16 %v153
    %v907 = vunpack.c.l.b16 %v154
    %v908 = vunpack.c.h.b16 %v154
    %v909 = vunpack.c.l.b16 %v155
    %v910 = vunpack.c.h.b16 %v155
    %v911 = vunpack.c.l.b16 %v156
    %v912 = vunpack.c.h.b16 %v156
    %v913 = vunpack.c.l.b16 %v157
    %v914 = vunpack.c.h.b16 %v157
    %v915 = vunpack.c.l.b16 %v158
    %v916 = vunpack.c.h.b16 %v158
    %v917 = vunpack.c.l.b16 %v159
    %v918 = vunpack.c.h.b16 %v159
    %v919 = vunpack.c.l.b16 %v160
    %v920 = vunpack.c.h.b16 %v160
    %v921 = vunpack.c.l.b16 %v161
    %v922 = vunpack.c.h.b16 %v161
    %v923 = vunpack.c.l.b16 %v162
    %v924 = vunpack.c.h.b16 %v162
    %v925 = vunpack.c.l.b16 %v163
    %v926 = vunpack.c.h.b16 %v163
    %v927 = vunpack.c.l.b16 %v164
    %v928 = vunpack.c.h.b16 %v164
    %v929 = vunpack.c.l.b16 %v165
    %v930 = vunpack.c.h.b16 %v165
    %v931 = vunpack.c.l.b16 %v166
    %v932 = vunpack.c.h.b16 %v166
    %v933 = vunpack.c.l.b16 %v167
    %v934 = vunpack.c.h.b16 %v167
    %v935 = vunpack.c.l.b16 %v168
    %v936 = vunpack.c.h.b16 %v168
    %v937 = vunpack.c.l.b16 %v169
    %v938 = vunpack.c.h.b16 %v169
    %v939 = vunpack.c.l.b16 %v170
    %v940 = vunpack.c.h.b16 %v170
    %v941 = vunpack.c.l.b16 %v171
    %v942 = vunpack.c.h.b16 %v171
    %v943 = vunpack.c.l.b16 %v172
    %v944 = vunpack.c.h.b16 %v172
    %v945 = vunpack.c.l.b16 %v173
    %v946 = vunpack.c.h.b16 %v173
    %v947 = vunpack.c.l.b16 %v174
    %v948 = vunpack.c.h.b16 %v174
    %v949 = vunpack.c.l.b16 %v175
    %v950 = vunpack.c.h.b16 %v175
    %v951 = vunpack.c.l.b16 %v176
    %v952 = vunpack.c.h.b16 %v176
    %v953 = vunpack.c.l.b16 %v177
    %v954 = vunpack.c.h.b16 %v177
    %v955 = vunpack.c.l.b16 %v178
    %v956 = vunpack.c.h.b16 %v178
    %v957 = vunpack.c.l.b16 %v179
    %v958 = vunpack.c.h.b16 %v179
    %v959 = vunpack.c.l.b16 %v180
    %v960 = vunpack.c.h.b16 %v180
    %v961 = vunpack.c.l.b16 %v181
    %v962 = vunpack.c.h.b16 %v181
    %v963 = vunpack.c.l.b16 %v182
    %v964 = vunpack.c.h.b16 %v182
    %v965 = vunpack.c.l.b16 %v183
    %v966 = vunpack.c.h.b16 %v183
    %v967 = vunpack.c.l.b16 %v184
    %v968 = vunpack.c.h.b16 %v184
    %v969 = vunpack.c.l.b16 %v185
    %v970 = vunpack.c.h.b16 %v185
    %v971 = vunpack.c.l.b16 %v186
    %v972 = vunpack.c.h.b16 %v186
    %v973 = vunpack.c.l.b16 %v187
    %v974 = vunpack.c.h.b16 %v187
    %v975 = vunpack.c.l.b16 %v188
    %v976 = vunpack.c.h.b16 %v188
    %v977 = vunpack.c.l.b16 %v189
    %v978 = vunpack.c.h.b16 %v189
    %v979 = vunpack.c.l.b16 %v190
    %v980 = vunpack.c.h.b16 %v190
    %v981 = vunpack.c.l.b16 %v191
    %v982 = vunpack.c.h.b16 %v191
    %v983 = vunpack.c.l.b16 %v192
    %v984 = vunpack.c.h.b16 %v192
    %v985 = vunpack.c.l.b16 %v193
    %v986 = vunpack.c.h.b16 %v193
    %v987 = vunpack.c.l.b16 %v194
    %v988 = vunpack.c.h.b16 %v194
    %v989 = vunpack.c.l.b16 %v195
    %v990 = vunpack.c.h.b16 %v195
    %v991 = vunpack.c.l.b16 %v196
    %v992 = vunpack.c.h.b16 %v196
    %v993 = vunpack.c.l.b16 %v197
    %v994 = vunpack.c.h.b16 %v197
    %v995 = vunpack.c.l.b16 %v198
    %v996 = vunpack.c.h.b16 %v198
    %v997 = vunpack.c.l.b16 %v199
    %v998 = vunpack.c.h.b16 %v199
    %v999 = vunpack.c.l.b16 %v200
    %v1000 = vunpack.c.h.b16 %v200
    %v1001 = vunpack.c.l.b16 %v201
    %v1002 = vunpack.c.h.b16 %v201
    %v1003 = vunpack.c.l.b16 %v202
    %v1004 = vunpack.c.h.b16 %v202
    %v1005 = vunpack.c.l.b16 %v203
    %v1006 = vunpack.c.h.b16 %v203
    %v1007 = vunpack.c.l.b16 %v204
    %v1008 = vunpack.c.h.b16 %v204
    %v1009 = vunpack.c.l.b16 %v205
    %v1010 = vunpack.c.h.b16 %v205
    %v1011 = vunpack.c.l.b16 %v206
    %v1012 = vunpack.c.h.b16 %v206
    %v1013 = vunpack.c.l.b16 %v207
    %v1014 = vunpack.c.h.b16 %v207
    %v1015 = vunpack.c.l.b16 %v208
    %v1016 = vunpack.c.h.b16 %v208
    %v1017 = vunpack.c.l.b16 %v209
    %v1018 = vunpack.c.h.b16 %v209
    %v1019 = vunpack.c.l.b16 %v210
    %v1020 = vunpack.c.h.b16 %v210
    %v1021 = vunpack.c.l.b16 %v211
    %v1022 = vunpack.c.h.b16 %v211
    %v1023 = vunpack.c.l.b16 %v212
    %v1024 = vunpack.c.h.b16 %v212
    %v1025 = vunpack.c.l.b16 %v213
    %v1026 = vunpack.c.h.b16 %v213
    %v1027 = vunpack.c.l.b16 %v214
    %v1028 = vunpack.c.h.b16 %v214
    %v1029 = vunpack.c.l.b16 %v215
    %v1030 = vunpack.c.h.b16 %v215
    %v1031 = vunpack.c.l.b16 %v216
    %v1032 = vunpack.c.h.b16 %v216
    %v1033 = vunpack.c.l.b16 %v217
    %v1034 = vunpack.c.h.b16 %v217
    %v1035 = vunpack.c.l.b16 %v218
    %v1036 = vunpack.c.h.b16 %v218
    %v1037 = vunpack.c.l.b16 %v219
    %v1038 = vunpack.c.h.b16 %v219
    %v1039 = vunpack.c.l.b16 %v220
    %v1040 = vunpack.c.h.b16 %v220
    %v1041 = vunpack.c.l.b16 %v221
    %v1042 = vunpack.c.h.b16 %v221
    %v1043 = vunpack.c.l.b16 %v222
    %v1044 = vunpack.c.h.b16 %v222
    %v1045 = vunpack.c.l.b16 %v223
    %v1046 = vunpack.c.h.b16 %v223
    %v1047 = vunpack.c.l.b16 %v224
    %v1048 = vunpack.c.h.b16 %v224
    %v1049 = vunpack.c.l.b16 %v225
    %v1050 = vunpack.c.h.b16 %v225
    %v1051 = vunpack.c.l.b16 %v226
    %v1052 = vunpack.c.h.b16 %v226
    %v1053 = vunpack.c.l.b16 %v227
    %v1054 = vunpack.c.h.b16 %v227
    %v1055 = vunpack.c.l.b16 %v228
    %v1056 = vunpack.c.h.b16 %v228
    %v1057 = vunpack.c.l.b16 %v229
    %v1058 = vunpack.c.h.b16 %v229
    %v1059 = vunpack.c.l.b16 %v230
    %v1060 = vunpack.c.h.b16 %v230
    %v1061 = vunpack.c.l.b16 %v231
    %v1062 = vunpack.c.h.b16 %v231
    %v1063 = vunpack.c.l.b16 %v232
    %v1064 = vunpack.c.h.b16 %v232
    %v1065 = vunpack.c.l.b16 %v233
    %v1066 = vunpack.c.h.b16 %v233
    %v1067 = vunpack.c.l.b16 %v234
    %v1068 = vunpack.c.h.b16 %v234
    %v1069 = vunpack.c.l.b16 %v235
    %v1070 = vunpack.c.h.b16 %v235
    %v1071 = vunpack.c.l.b16 %v236
    %v1072 = vunpack.c.h.b16 %v236
    %v1073 = vunpack.c.l.b16 %v237
    %v1074 = vunpack.c.h.b16 %v237
    %v1075 = vunpack.c.l.b16 %v238
    %v1076 = vunpack.c.h.b16 %v238
    %v1077 = vunpack.c.l.b16 %v239
    %v1078 = vunpack.c.h.b16 %v239
    %v1079 = vunpack.c.l.b16 %v240
    %v1080 = vunpack.c.h.b16 %v240
    %v1081 = vunpack.c.l.b16 %v241
    %v1082 = vunpack.c.h.b16 %v241
    %v1083 = vunpack.c.l.b16 %v242
    %v1084 = vunpack.c.h.b16 %v242
    %v1085 = vunpack.c.l.b16 %v243
    %v1086 = vunpack.c.h.b16 %v243
    %v1087 = vunpack.c.l.b16 %v244
    %v1088 = vunpack.c.h.b16 %v244
    %v1089 = vunpack.c.l.b16 %v245
    %v1090 = vunpack.c.h.b16 %v245
    %v1091 = vunpack.c.l.b16 %v246
    %v1092 = vunpack.c.h.b16 %v246
    %v1093 = vunpack.c.l.b16 %v247
    %v1094 = vunpack.c.h.b16 %v247
    %v1095 = vunpack.c.l.b16 %v248
    %v1096 = vunpack.c.h.b16 %v248
    %v1097 = vunpack.c.l.b16 %v249
    %v1098 = vunpack.c.h.b16 %v249
    %v1099 = vunpack.c.l.b16 %v250
    %v1100 = vunpack.c.h.b16 %v250
    %v1101 = vunpack.c.l.b16 %v251
    %v1102 = vunpack.c.h.b16 %v251
    %v1103 = vunpack.c.l.b16 %v252
    %v1104 = vunpack.c.h.b16 %v252
    %v1105 = vunpack.c.l.b16 %v253
    %v1106 = vunpack.c.h.b16 %v253
    %v1107 = vunpack.c.l.b16 %v254
    %v1108 = vunpack.c.h.b16 %v254
    %v1109 = vunpack.c.l.b16 %v255
    %v1110 = vunpack.c.h.b16 %v255
    %v1111 = vunpack.c.l.b16 %v256
    %v1112 = vunpack.c.h.b16 %v256
    %v1113 = vunpack.c.l.b16 %v257
    %v1114 = vunpack.c.h.b16 %v257
    %v1115 = vunpack.c.l.b16 %v258
    %v1116 = vunpack.c.h.b16 %v258
    %v1117 = vunpack.c.l.b16 %v259
    %v1118 = vunpack.c.h.b16 %v259
    %v1119 = vunpack.c.l.b16 %v260
    %v1120 = vunpack.c.h.b16 %v260
    %v1121 = vunpack.c.l.b16 %v261
    %v1122 = vunpack.c.h.b16 %v261
    %v1123 = vunpack.c.l.b16 %v262
    %v1124 = vunpack.c.h.b16 %v262
    %v1125 = vunpack.c.l.b16 %v263
    %v1126 = vunpack.c.h.b16 %v263
    %v1127 = vunpack.c.l.b16 %v264
    %v1128 = vunpack.c.h.b16 %v264
    %v1129 = vunpack.c.l.b16 %v265
    %v1130 = vunpack.c.h.b16 %v265
    %v1131 = vunpack.c.l.b16 %v266
    %v1132 = vunpack.c.h.b16 %v266
    %v1133 = vunpack.c.l.b16 %v267
    %v1134 = vunpack.c.h.b16 %v267
    %v1135 = vunpack.c.l.b16 %v268
    %v1136 = vunpack.c.h.b16 %v268
    %v1137 = vunpack.c.l.b16 %v269
    %v1138 = vunpack.c.h.b16 %v269
    %v1139 = vunpack.c.l.b16 %v270
    %v1140 = vunpack.c.h.b16 %v270
    %v1141 = vunpack.c.l.b16 %v271
    %v1142 = vunpack.c.h.b16 %v271
    %v1143 = vunpack.c.l.b16 %v272
    %v1144 = vunpack.c.h.b16 %v272
    %v1145 = vunpack.c.l.b16 %v273
    %v1146 = vunpack.c.h.b16 %v273
    %v1147 = vunpack.c.l.b16 %v274
    %v1148 = vunpack.c.h.b16 %v274
    %v1149 = vunpack.c.l.b16 %v275
    %v1150 = vunpack.c.h.b16 %v275
    %v1151 = vunpack.c.l.b16 %v276
    %v1152 = vunpack.c.h.b16 %v276
    %v1153 = vunpack.c.l.b16 %v277
    %v1154 = vunpack.c.h.b16 %v277
    %v1155 = vunpack.c.l.b16 %v278
    %v1156 = vunpack.c.h.b16 %v278
    %v1157 = vunpack.c.l.b16 %v279
    %v1158 = vunpack.c.h.b16 %v279
    %v1159 = vunpack.c.l.b16 %v280
    %v1160 = vunpack.c.h.b16 %v280
    %v1161 = vunpack.c.l.b16 %v281
    %v1162 = vunpack.c.h.b16 %v281
    %v1163 = vunpack.c.l.b16 %v282
    %v1164 = vunpack.c.h.b16 %v282
    %v1165 = vunpack.c.l.b16 %v283
    %v1166 = vunpack.c.h.b16 %v283
    %v1167 = vunpack.c.l.b16 %v284
    %v1168 = vunpack.c.h.b16 %v284
    %v1169 = vunpack.c.l.b16 %v285
    %v1170 = vunpack.c.h.b16 %v285
    %v1171 = vunpack.c.l.b16 %v286
    %v1172 = vunpack.c.h.b16 %v286
    %v1173 = vunpack.c.l.b16 %v287
    %v1174 = vunpack.c.h.b16 %v287
    %v1175 = vunpack.c.l.b16 %v288
    %v1176 = vunpack.c.h.b16 %v288
    %v1177 = vunpack.c.l.b16 %v289
    %v1178 = vunpack.c.h.b16 %v289
    %v1179 = vunpack.c.l.b16 %v290
    %v1180 = vunpack.c.h.b16 %v290
    %v1181 = vunpack.c.l.b16 %v291
    %v1182 = vunpack.c.h.b16 %v291
    %v1183 = vunpack.c.l.b16 %v292
    %v1184 = vunpack.c.h.b16 %v292
    %v1185 = vunpack.c.l.b16 %v293
    %v1186 = vunpack.c.h.b16 %v293
    %v1187 = vunpack.c.l.b16 %v294
    %v1188 = vunpack.c.h.b16 %v294
    %v1189 = vunpack.c.l.b16 %v295
    %v1190 = vunpack.c.h.b16 %v295
    %v1191 = vunpack.c.l.b16 %v296
    %v1192 = vunpack.c.h.b16 %v296
    %v1193 = vunpack.c.l.b16 %v297
    %v1194 = vunpack.c.h.b16 %v297
    %v1195 = vunpack.c.l.b16 %v298
    %v1196 = vunpack.c.h.b16 %v298
    %v1197 = vunpack.c.l.b16 %v299
    %v1198 = vunpack.c.h.b16 %v299
    %v1199 = vunpack.c.l.b16 %v300
    %v1200 = vunpack.c.h.b16 %v300
    %v1201 = vunpack.c.l.b16 %v301
    %v1202 = vunpack.c.h.b16 %v301
    %v1203 = vunpack.c.l.b16 %v302
    %v1204 = vunpack.c.h.b16 %v302
    %v1205 = vunpack.c.l.b16 %v303
    %v1206 = vunpack.c.h.b16 %v303
    %v1207 = vunpack.c.l.b16 %v304
    %v1208 = vunpack.c.h.b16 %v304
    %v1209 = vunpack.c.l.b16 %v305
    %v1210 = vunpack.c.h.b16 %v305
    %v1211 = vunpack.c.l.b16 %v306
    %v1212 = vunpack.c.h.b16 %v306
    %v1213 = vunpack.c.l.b16 %v307
    %v1214 = vunpack.c.h.b16 %v307
    %v1215 = vunpack.c.l.b16 %v308
    %v1216 = vunpack.c.h.b16 %v308
    %v1217 = vunpack.c.l.b16 %v309
    %v1218 = vunpack.c.h.b16 %v309
    %v1219 = vunpack.c.l.b16 %v310
    %v1220 = vunpack.c.h.b16 %v310
    %v1221 = vunpack.c.l.b16 %v311
    %v1222 = vunpack.c.h.b16 %v311
    %v1223 = vunpack.c.l.b16 %v312
    %v1224 = vunpack.c.h.b16 %v312
    %v1225 = vunpack.c.l.b16 %v313
    %v1226 = vunpack.c.h.b16 %v313
    %v1227 = vunpack.c.l.b16 %v314
    %v1228 = vunpack.c.h.b16 %v314
    %v1229 = vunpack.c.l.b16 %v315
    %v1230 = vunpack.c.h.b16 %v315
    %v1231 = vunpack.c.l.b16 %v316
    %v1232 = vunpack.c.h.b16 %v316
    %v1233 = vunpack.c.l.b16 %v317
    %v1234 = vunpack.c.h.b16 %v317
    %v1235 = vunpack.c.l.b16 %v318
    %v1236 = vunpack.c.h.b16 %v318
    %v1237 = vunpack.c.l.b16 %v319
    %v1238 = vunpack.c.h.b16 %v319
    %v1239 = vunpack.c.l.b16 %v320
    %v1240 = vunpack.c.h.b16 %v320
    %v1241 = vunpack.c.l.b16 %v321
    %v1242 = vunpack.c.h.b16 %v321
    %v1243 = vunpack.c.l.b16 %v322
    %v1244 = vunpack.c.h.b16 %v322
    %v1245 = vunpack.c.l.b16 %v323
    %v1246 = vunpack.c.h.b16 %v323
    %v1247 = vunpack.c.l.b16 %v324
    %v1248 = vunpack.c.h.b16 %v324
    %v1249 = vunpack.c.l.b16 %v325
    %v1250 = vunpack.c.h.b16 %v325
    %v1251 = vunpack.c.l.b16 %v326
    %v1252 = vunpack.c.h.b16 %v326
    %v1253 = vunpack.c.l.b16 %v327
    %v1254 = vunpack.c.h.b16 %v327
    %v1255 = vunpack.c.l.b16 %v328
    %v1256 = vunpack.c.h.b16 %v328
    %v1257 = vunpack.c.l.b16 %v329
    %v1258 = vunpack.c.h.b16 %v329
    %v1259 = vunpack.c.l.b16 %v330
    %v1260 = vunpack.c.h.b16 %v330
    %v1261 = vunpack.c.l.b16 %v331
    %v1262 = vunpack.c.h.b16 %v331
    %v1263 = vunpack.c.l.b16 %v332
    %v1264 = vunpack.c.h.b16 %v332
    %v1265 = vunpack.c.l.b16 %v333
    %v1266 = vunpack.c.h.b16 %v333
    %v1267 = vunpack.c.l.b16 %v334
    %v1268 = vunpack.c.h.b16 %v334
    %v1269 = vunpack.c.l.b16 %v335
    %v1270 = vunpack.c.h.b16 %v335
    %v1271 = vunpack.c.l.b16 %v336
    %v1272 = vunpack.c.h.b16 %v336
    %v1273 = vunpack.c.l.b16 %v337
    %v1274 = vunpack.c.h.b16 %v337
    %v1275 = vunpack.c.l.b16 %v338
    %v1276 = vunpack.c.h.b16 %v338
    %v1277 = vunpack.c.l.b16 %v339
    %v1278 = vunpack.c.h.b16 %v339
    %v1279 = vunpack.c.l.b16 %v340
    %v1280 = vunpack.c.h.b16 %v340
    %v1281 = vunpack.c.l.b16 %v341
    %v1282 = vunpack.c.h.b16 %v341
    %v1283 = vunpack.c.l.b16 %v342
    %v1284 = vunpack.c.h.b16 %v342
    %v1285 = vunpack.c.l.b16 %v343
    %v1286 = vunpack.c.h.b16 %v343
    %v1287 = vunpack.c.l.b16 %v344
    %v1288 = vunpack.c.h.b16 %v344
    %v1289 = vunpack.c.l.b16 %v345
    %v1290 = vunpack.c.h.b16 %v345
    %v1291 = vunpack.c.l.b16 %v346
    %v1292 = vunpack.c.h.b16 %v346
    %v1293 = vunpack.c.l.b16 %v347
    %v1294 = vunpack.c.h.b16 %v347
    %v1295 = vunpack.c.l.b16 %v348
    %v1296 = vunpack.c.h.b16 %v348
    %v1297 = vunpack.c.l.b16 %v349
    %v1298 = vunpack.c.h.b16 %v349
    %v1299 = vunpack.c.l.b16 %v350
    %v1300 = vunpack.c.h.b16 %v350
    %v1301 = vunpack.c.l.b16 %v351
    %v1302 = vunpack.c.h.b16 %v351
    %v1303 = vunpack.c.l.b16 %v352
    %v1304 = vunpack.c.h.b16 %v352
    %v1305 = vunpack.c.l.b16 %v353
    %v1306 = vunpack.c.h.b16 %v353
    %v1307 = vunpack.c.l.b16 %v354
    %v1308 = vunpack.c.h.b16 %v354
    %v1309 = vunpack.c.l.b16 %v355
    %v1310 = vunpack.c.h.b16 %v355
    %v1311 = vunpack.c.l.b16 %v356
    %v1312 = vunpack.c.h.b16 %v356
    %v1313 = vunpack.c.l.b16 %v357
    %v1314 = vunpack.c.h.b16 %v357
    %v1315 = vunpack.c.l.b16 %v358
    %v1316 = vunpack.c.h.b16 %v358
    %v1317 = vunpack.c.l.b16 %v359
    %v1318 = vunpack.c.h.b16 %v359
    %v1319 = vunpack.c.l.b16 %v360
    %v1320 = vunpack.c.h.b16 %v360
    %v1321 = vunpack.c.l.b16 %v361
    %v1322 = vunpack.c.h.b16 %v361
    %v1323 = vunpack.c.l.b16 %v362
    %v1324 = vunpack.c.h.b16 %v362
    %v1325 = vunpack.c.l.b16 %v363
    %v1326 = vunpack.c.h.b16 %v363
    %v1327 = vunpack.c.l.b16 %v364
    %v1328 = vunpack.c.h.b16 %v364
    %v1329 = vunpack.c.l.b16 %v365
    %v1330 = vunpack.c.h.b16 %v365
    %v1331 = vunpack.c.l.b16 %v366
    %v1332 = vunpack.c.h.b16 %v366
    %v1333 = vunpack.c.l.b16 %v367
    %v1334 = vunpack.c.h.b16 %v367
    %v1335 = vunpack.c.l.b16 %v368
    %v1336 = vunpack.c.h.b16 %v368
    %v1337 = vunpack.c.l.b16 %v369
    %v1338 = vunpack.c.h.b16 %v369
    %v1339 = vunpack.c.l.b16 %v370
    %v1340 = vunpack.c.h.b16 %v370
    %v1341 = vunpack.c.l.b16 %v371
    %v1342 = vunpack.c.h.b16 %v371
    %v1343 = vunpack.c.l.b16 %v372
    %v1344 = vunpack.c.h.b16 %v372
    %v1345 = vunpack.c.l.b16 %v373
    %v1346 = vunpack.c.h.b16 %v373
    %v1347 = vunpack.c.l.b16 %v374
    %v1348 = vunpack.c.h.b16 %v374
    %v1349 = vunpack.c.l.b16 %v375
    %v1350 = vunpack.c.h.b16 %v375
    %v1351 = vunpack.c.l.b16 %v376
    %v1352 = vunpack.c.h.b16 %v376
    %v1353 = vunpack.c.l.b16 %v377
    %v1354 = vunpack.c.h.b16 %v377
    %v1355 = vunpack.c.l.b16 %v378
    %v1356 = vunpack.c.h.b16 %v378
    %v1357 = vunpack.c.l.b16 %v379
    %v1358 = vunpack.c.h.b16 %v379
    %v1359 = vunpack.c.l.b16 %v380
    %v1360 = vunpack.c.h.b16 %v380
    %v1361 = vunpack.c.l.b16 %v381
    %v1362 = vunpack.c.h.b16 %v381
    %v1363 = vunpack.c.l.b16 %v382
    %v1364 = vunpack.c.h.b16 %v382
    %v1365 = vunpack.c.l.b16 %v383
    %v1366 = vunpack.c.h.b16 %v383
    %v1367 = vunpack.c.l.b16 %v384
    %v1368 = vunpack.c.h.b16 %v384
    %v1369 = vunpack.c.l.b16 %v385
    %v1370 = vunpack.c.h.b16 %v385
    %v1371 = vunpack.c.l.b16 %v386
    %v1372 = vunpack.c.h.b16 %v386
    %v1373 = vunpack.c.l.b16 %v387
    %v1374 = vunpack.c.h.b16 %v387
    %v1375 = vunpack.c.l.b16 %v388
    %v1376 = vunpack.c.h.b16 %v388
    %v1377 = vunpack.c.l.b16 %v389
    %v1378 = vunpack.c.h.b16 %v389
    %v1379 = vunpack.c.l.b16 %v390
    %v1380 = vunpack.c.h.b16 %v390
    %v1381 = vunpack.c.l.b16 %v391
    %v1382 = vunpack.c.h.b16 %v391
    %v1383 = vunpack.c.l.b16 %v392
    %v1384 = vunpack.c.h.b16 %v392
    %v1385 = vunpack.c.l.b16 %v393
    %v1386 = vunpack.c.h.b16 %v393
    %v1387 = vunpack.c.l.b16 %v394
    %v1388 = vunpack.c.h.b16 %v394
    %v1389 = vunpack.c.l.b16 %v395
    %v1390 = vunpack.c.h.b16 %v395
    %v1391 = vunpack.c.l.b16 %v396
    %v1392 = vunpack.c.h.b16 %v396
    %v1393 = vunpack.c.l.b16 %v397
    %v1394 = vunpack.c.h.b16 %v397
    %v1395 = vunpack.c.l.b16 %v398
    %v1396 = vunpack.c.h.b16 %v398
    %v1397 = vunpack.c.l.b16 %v399
    %v1398 = vunpack.c.h.b16 %v399
    %v1399 = vunpack.c.l.b16 %v400
    %v1400 = vunpack.c.h.b16 %v400
    %v1401 = vunpack.c.l.b16 %v401
    %v1402 = vunpack.c.h.b16 %v401
    %v1403 = vunpack.c.l.b16 %v402
    %v1404 = vunpack.c.h.b16 %v402
    %v1405 = vunpack.c.l.b16 %v403
    %v1406 = vunpack.c.h.b16 %v403
    %v1407 = vunpack.c.l.b16 %v404
    %v1408 = vunpack.c.h.b16 %v404
    %v1409 = vunpack.c.l.b16 %v405
    %v1410 = vunpack.c.h.b16 %v405
    %v1411 = vunpack.c.l.b16 %v406
    %v1412 = vunpack.c.h.b16 %v406
    %v1413 = vunpack.c.l.b16 %v407
    %v1414 = vunpack.c.h.b16 %v407
    %v1415 = vunpack.c.l.b16 %v408
    %v1416 = vunpack.c.h.b16 %v408
    %v1417 = vunpack.c.l.b16 %v409
    %v1418 = vunpack.c.h.b16 %v409
    %v1419 = vunpack.c.l.b16 %v410
    %v1420 = vunpack.c.h.b16 %v410
    %v1421 = vunpack.c.l.b16 %v411
    %v1422 = vunpack.c.h.b16 %v411
    %v1423 = vunpack.c.l.b16 %v412
    %v1424 = vunpack.c.h.b16 %v412
    %v1425 = vunpack.c.l.b16 %v413
    %v1426 = vunpack.c.h.b16 %v413
    %v1427 = vunpack.c.l.b16 %v414
    %v1428 = vunpack.c.h.b16 %v414
    %v1429 = vunpack.c.l.b16 %v415
    %v1430 = vunpack.c.h.b16 %v415
    %v1431 = vunpack.c.l.b16 %v416
    %v1432 = vunpack.c.h.b16 %v416
    %v1433 = vunpack.c.l.b16 %v417
    %v1434 = vunpack.c.h.b16 %v417
    %v1435 = vunpack.c.l.b16 %v418
    %v1436 = vunpack.c.h.b16 %v418
    %v1437 = vunpack.c.l.b16 %v419
    %v1438 = vunpack.c.h.b16 %v419
    %v1439 = vunpack.c.l.b16 %v420
    %v1440 = vunpack.c.h.b16 %v420
    %v1441 = vunpack.c.l.b16 %v421
    %v1442 = vunpack.c.h.b16 %v421
    %v1443 = vunpack.c.l.b16 %v422
    %v1444 = vunpack.c.h.b16 %v422
    %v1445 = vunpack.c.l.b16 %v423
    %v1446 = vunpack.c.h.b16 %v423
    %v1447 = vunpack.c.l.b16 %v424
    %v1448 = vunpack.c.h.b16 %v424
    %v1449 = vunpack.c.l.b16 %v425
    %v1450 = vunpack.c.h.b16 %v425
    %v1451 = vunpack.c.l.b16 %v426
    %v1452 = vunpack.c.h.b16 %v426
    %v1453 = vunpack.c.l.b16 %v427
    %v1454 = vunpack.c.h.b16 %v427
    %v1455 = vunpack.c.l.b16 %v428
    %v1456 = vunpack.c.h.b16 %v428
    %v1457 = vunpack.c.l.b16 %v429
    %v1458 = vunpack.c.h.b16 %v429
    %v1459 = vunpack.c.l.b16 %v430
    %v1460 = vunpack.c.h.b16 %v430
    %v1461 = vunpack.c.l.b16 %v431
    %v1462 = vunpack.c.h.b16 %v431
    %v1463 = vunpack.c.l.b16 %v432
    %v1464 = vunpack.c.h.b16 %v432
    %v1465 = vpack.c.b16 %v829, %v825
    %v1466 = vpack.c.b16 %v830, %v826
    %v1467 = vpack.c.b16 %v831, %v827
    %v1468 = vpack.c.b16 %v832, %v828
    %v1469 = vpack.c.b16 %v837, %v833
    %v1470 = vpack.c.b16 %v838, %v834
    %v1471 = vpack.c.b16 %v839, %v835
    %v1472 = vpack.c.b16 %v840, %v836
    %v1473 = vpack.c.b16 %v845, %v841
    %v1474 = vpack.c.b16 %v846, %v842
    %v1475 = vpack.c.b16 %v847, %v843
    %v1476 = vpack.c.b16 %v848, %v844
    %v1477 = vpack.c.b16 %v853, %v849
    %v1478 = vpack.c.b16 %v854, %v850
    %v1479 = vpack.c.b16 %v855, %v851
    %v1480 = vpack.c.b16 %v856, %v852
    %v1481 = vpack.c.b16 %v861, %v857
    %v1482 = vpack.c.b16 %v862, %v858
    %v1483 = vpack.c.b16 %v863, %v859
    %v1484 = vpack.c.b16 %v864, %v860
    %v1485 = vpack.c.b16 %v869, %v865
    %v1486 = vpack.c.b16 %v870, %v866
    %v1487 = vpack.c.b16 %v871, %v867
    %v1488 = vpack.c.b16 %v872, %v868
    %v1489 = vpack.c.b16 %v877, %v873
    %v1490 = vpack.c.b16 %v878, %v874
    %v1491 = vpack.c.b16 %v879, %v875
    %v1492 = vpack.c.b16 %v880, %v876
    %v1493 = vpack.c.b16 %v885, %v881
    %v1494 = vpack.c.b16 %v886, %v882
    %v1495 = vpack.c.b16 %v887, %v883
    %v1496 = vpack.c.b16 %v888, %v884
    %v1497 = vpack.c.b16 %v893, %v889
    %v1498 = vpack.c.b16 %v894, %v890
    %v1499 = vpack.c.b16 %v895, %v891
    %v1500 = vpack.c.b16 %v896, %v892
    %v1501 = vpack.c.b16 %v901, %v897
    %v1502 = vpack.c.b16 %v902, %v898
    %v1503 = vpack.c.b16 %v903, %v899
    %v1504 = vpack.c.b16 %v904, %v900
    %v1505 = vpack.c.b16 %v909, %v905
    %v1506 = vpack.c.b16 %v910, %v906
    %v1507 = vpack.c.b16 %v911, %v907
    %v1508 = vpack.c.b16 %v912, %v908
    %v1509 = vpack.c.b16 %v917, %v913
    %v1510 = vpack.c.b16 %v918, %v914
    %v1511 = vpack.c.b16 %v919, %v915
    %v1512 = vpack.c.b16 %v920, %v916
    %v1513 = vpack.c.b16 %v925, %v921
    %v1514 = vpack.c.b16 %v926, %v922
    %v1515 = vpack.c.b16 %v927, %v923
    %v1516 = vpack.c.b16 %v928, %v924
    %v1517 = vpack.c.b16 %v933, %v929
    %v1518 = vpack.c.b16 %v934, %v930
    %v1519 = vpack.c.b16 %v935, %v931
    %v1520 = vpack.c.b16 %v936, %v932
    %v1521 = vpack.c.b16 %v941, %v937
    %v1522 = vpack.c.b16 %v942, %v938
    %v1523 = vpack.c.b16 %v943, %v939
    %v1524 = vpack.c.b16 %v944, %v940
    %v1525 = vpack.c.b16 %v949, %v945
    %v1526 = vpack.c.b16 %v950, %v946
    %v1527 = vpack.c.b16 %v951, %v947
    %v1528 = vpack.c.b16 %v952, %v948
    %v1529 = vpack.c.b16 %v957, %v953
    %v1530 = vpack.c.b16 %v958, %v954
    %v1531 = vpack.c.b16 %v959, %v955
    %v1532 = vpack.c.b16 %v960, %v956
    %v1533 = vpack.c.b16 %v965, %v961
    %v1534 = vpack.c.b16 %v966, %v962
    %v1535 = vpack.c.b16 %v967, %v963
    %v1536 = vpack.c.b16 %v968, %v964
    %v1537 = vpack.c.b16 %v973, %v969
    %v1538 = vpack.c.b16 %v974, %v970
    %v1539 = vpack.c.b16 %v975, %v971
    %v1540 = vpack.c.b16 %v976, %v972
    %v1541 = vpack.c.b16 %v981, %v977
    %v1542 = vpack.c.b16 %v982, %v978
    %v1543 = vpack.c.b16 %v983, %v979
    %v1544 = vpack.c.b16 %v984, %v980
    %v1545 = vpack.c.b16 %v989, %v985
    %v1546 = vpack.c.b16 %v990, %v986
    %v1547 = vpack.c.b16 %v991, %v987
    %v1548 = vpack.c.b16 %v992, %v988
    %v1549 = vpack.c.b16 %v997, %v993
    %v1550 = vpack.c.b16 %v998, %v994
    %v1551 = vpack.c.b16 %v999, %v995
    %v1552 = vpack.c.b16 %v1000, %v996
    %v1553 = vpack.c.b16 %v1005, %v1001
    %v1554 = vpack.c.b16 %v1006, %v1002
    %v1555 = vpack.c.b16 %v1007, %v1003
    %v1556 = vpack.c.b16 %v1008, %v1004
    %v1557 = vpack.c.b16 %v1013, %v1009
    %v1558 = vpack.c.b16 %v1014, %v1010
    %v1559 = vpack.c.b16 %v1015, %v1011
    %v1560 = vpack.c.b16 %v1016, %v1012
    %v1561 = vpack.c.b16 %v1021, %v1017
    %v1562 = vpack.c.b16 %v1022, %v1018
    %v1563 = vpack.c.b16 %v1023, %v1019
    %v1564 = vpack.c.b16 %v1024, %v1020
    %v1565 = vpack.c.b16 %v1029, %v1025
    %v1566 = vpack.c.b16 %v1030, %v1026
    %v1567 = vpack.c.b16 %v1031, %v1027
    %v1568 = vpack.c.b16 %v1032, %v1028
    %v1569 = vpack.c.b16 %v1037, %v1033
    %v1570 = vpack.c.b16 %v1038, %v1034
    %v1571 = vpack.c.b16 %v1039, %v1035
    %v1572 = vpack.c.b16 %v1040, %v1036
    %v1573 = vpack.c.b16 %v1045, %v1041
    %v1574 = vpack.c.b16 %v1046, %v1042
    %v1575 = vpack.c.b16 %v1047, %v1043
    %v1576 = vpack.c.b16 %v1048, %v1044
    %v1577 = vpack.c.b16 %v1053, %v1049
    %v1578 = vpack.c.b16 %v1054, %v1050
    %v1579 = vpack.c.b16 %v1055, %v1051
    %v1580 = vpack.c.b16 %v1056, %v1052
    %v1581 = vpack.c.b16 %v1061, %v1057
    %v1582 = vpack.c.b16 %v1062, %v1058
    %v1583 = vpack.c.b16 %v1063, %v1059
    %v1584 = vpack.c.b16 %v1064, %v1060
    %v1585 = vpack.c.b16 %v1069, %v1065
    %v1586 = vpack.c.b16 %v1070, %v1066
    %v1587 = vpack.c.b16 %v1071, %v1067
    %v1588 = vpack.c.b16 %v1072, %v1068
    %v1589 = vpack.c.b16 %v1077, %v1073
    %v1590 = vpack.c.b16 %v1078, %v1074
    %v1591 = vpack.c.b16 %v1079, %v1075
    %v1592 = vpack.c.b16 %v1080, %v1076
    %v1593 = vpack.c.b16 %v1085, %v1081
    %v1594 = vpack.c.b16 %v1086, %v1082
    %v1595 = vpack.c.b16 %v1087, %v1083
    %v1596 = vpack.c.b16 %v1088, %v1084
    %v1597 = vpack.c.b16 %v1093, %v1089
    %v1598 = vpack.c.b16 %v1094, %v1090
    %v1599 = vpack.c.b16 %v1095, %v1091
    %v1600 = vpack.c.b16 %v1096, %v1092
    %v1601 = vpack.c.b16 %v1101, %v1097
    %v1602 = vpack.c.b16 %v1102, %v1098
    %v1603 = vpack.c.b16 %v1103, %v1099
    %v1604 = vpack.c.b16 %v1104, %v1100
    %v1605 = vpack.c.b16 %v1109, %v1105
    %v1606 = vpack.c.b16 %v1110, %v1106
    %v1607 = vpack.c.b16 %v1111, %v1107
    %v1608 = vpack.c.b16 %v1112, %v1108
    %v1609 = vpack.c.b16 %v1117, %v1113
    %v1610 = vpack.c.b16 %v1118, %v1114
    %v1611 = vpack.c.b16 %v1119, %v1115
    %v1612 = vpack.c.b16 %v1120, %v1116
    %v1613 = vpack.c.b16 %v1125, %v1121
    %v1614 = vpack.c.b16 %v1126, %v1122
    %v1615 = vpack.c.b16 %v1127, %v1123
    %v1616 = vpack.c.b16 %v1128, %v1124
    %v1617 = vpack.c.b16 %v1133, %v1129
    %v1618 = vpack.c.b16 %v1134, %v1130
    %v1619 = vpack.c.b16 %v1135, %v1131
    %v1620 = vpack.c.b16 %v1136, %v1132
    %v1621 = vpack.c.b16 %v1141, %v1137
    %v1622 = vpack.c.b16 %v1142, %v1138
    %v1623 = vpack.c.b16 %v1143, %v1139
    %v1624 = vpack.c.b16 %v1144, %v1140
    %v1625 = vpack.c.b16 %v1149, %v1145
    %v1626 = vpack.c.b16 %v1150, %v1146
    %v1627 = vpack.c.b16 %v1151, %v1147
    %v1628 = vpack.c.b16 %v1152, %v1148
    %v1629 = vpack.c.b16 %v1157, %v1153
    %v1630 = vpack.c.b16 %v1158, %v1154
    %v1631 = vpack.c.b16 %v1159, %v1155
    %v1632 = vpack.c.b16 %v1160, %v1156
    %v1633 = vpack.c.b16 %v1165, %v1161
    %v1634 = vpack.c.b16 %v1166, %v1162
    %v1635 = vpack.c.b16 %v1167, %v1163
    %v1636 = vpack.c.b16 %v1168, %v1164
    %v1637 = vpack.c.b16 %v1173, %v1169
    %v1638 = vpack.c.b16 %v1174, %v1170
    %v1639 = vpack.c.b16 %v1175, %v1171
    %v1640 = vpack.c.b16 %v1176, %v1172
    %v1641 = vpack.c.b16 %v1181, %v1177
    %v1642 = vpack.c.b16 %v1182, %v1178
    %v1643 = vpack.c.b16 %v1183, %v1179
    %v1644 = vpack.c.b16 %v1184, %v1180
    %v1645 = vpack.c.b16 %v1189, %v1185
    %v1646 = vpack.c.b16 %v1190, %v1186
    %v1647 = vpack.c.b16 %v1191, %v1187
    %v1648 = vpack.c.b16 %v1192, %v1188
    %v1649 = vpack.c.b16 %v1197, %v1193
    %v1650 = vpack.c.b16 %v1198, %v1194
    %v1651 = vpack.c.b16 %v1199, %v1195
    %v1652 = vpack.c.b16 %v1200, %v1196
    %v1653 = vpack.c.b16 %v1205, %v1201
    %v1654 = vpack.c.b16 %v1206, %v1202
    %v1655 = vpack.c.b16 %v1207, %v1203
    %v1656 = vpack.c.b16 %v1208, %v1204
    %v1657 = vpack.c.b16 %v1213, %v1209
    %v1658 = vpack.c.b16 %v1214, %v1210
    %v1659 = vpack.c.b16 %v1215, %v1211
    %v1660 = vpack.c.b16 %v1216, %v1212
    %v1661 = vpack.c.b16 %v1221, %v1217
    %v1662 = vpack.c.b16 %v1222, %v1218
    %v1663 = vpack.c.b16 %v1223, %v1219
    %v1664 = vpack.c.b16 %v1224, %v1220
    %v1665 = vpack.c.b16 %v1229, %v1225
    %v1666 = vpack.c.b16 %v1230, %v1226
    %v1667 = vpack.c.b16 %v1231, %v1227
    %v1668 = vpack.c.b16 %v1232, %v1228
    %v1669 = vpack.c.b16 %v1237, %v1233
    %v1670 = vpack.c.b16 %v1238, %v1234
    %v1671 = vpack.c.b16 %v1239, %v1235
    %v1672 = vpack.c.b16 %v1240, %v1236
    %v1673 = vpack.c.b16 %v1245, %v1241
    %v1674 = vpack.c.b16 %v1246, %v1242
    %v1675 = vpack.c.b16 %v1247, %v1243
    %v1676 = vpack.c.b16 %v1248, %v1244
    %v1677 = vpack.c.b16 %v1253, %v1249
    %v1678 = vpack.c.b16 %v1254, %v1250
    %v1679 = vpack.c.b16 %v1255, %v1251
    %v1680 = vpack.c.b16 %v1256, %v1252
    %v1681 = vpack.c.b16 %v1261, %v1257
    %v1682 = vpack.c.b16 %v1262, %v1258
    %v1683 = vpack.c.b16 %v1263, %v1259
    %v1684 = vpack.c.b16 %v1264, %v1260
    %v1685 = vpack.c.b16 %v1269, %v1265
    %v1686 = vpack.c.b16 %v1270, %v1266
    %v1687 = vpack.c.b16 %v1271, %v1267
    %v1688 = vpack.c.b16 %v1272, %v1268
    %v1689 = vpack.c.b16 %v1277, %v1273
    %v1690 = vpack.c.b16 %v1278, %v1274
    %v1691 = vpack.c.b16 %v1279, %v1275
    %v1692 = vpack.c.b16 %v1280, %v1276
    %v1693 = vpack.c.b16 %v1285, %v1281
    %v1694 = vpack.c.b16 %v1286, %v1282
    %v1695 = vpack.c.b16 %v1287, %v1283
    %v1696 = vpack.c.b16 %v1288, %v1284
    %v1697 = vpack.c.b16 %v1293, %v1289
    %v1698 = vpack.c.b16 %v1294, %v1290
    %v1699 = vpack.c.b16 %v1295, %v1291
    %v1700 = vpack.c.b16 %v1296, %v1292
    %v1701 = vpack.c.b16 %v1301, %v1297
    %v1702 = vpack.c.b16 %v1302, %v1298
    %v1703 = vpack.c.b16 %v1303, %v1299
    %v1704 = vpack.c.b16 %v1304, %v1300
    %v1705 = vpack.c.b16 %v1309, %v1305
    %v1706 = vpack.c.b16 %v1310, %v1306
    %v1707 = vpack.c.b16 %v1311, %v1307
    %v1708 = vpack.c.b16 %v1312, %v1308
    %v1709 = vpack.c.b16 %v1317, %v1313
    %v1710 = vpack.c.b16 %v1318, %v1314
    %v1711 = vpack.c.b16 %v1319, %v1315
    %v1712 = vpack.c.b16 %v1320, %v1316
    %v1713 = vpack.c.b16 %v1325, %v1321
    %v1714 = vpack.c.b16 %v1326, %v1322
    %v1715 = vpack.c.b16 %v1327, %v1323
    %v1716 = vpack.c.b16 %v1328, %v1324
    %v1717 = vpack.c.b16 %v1333, %v1329
    %v1718 = vpack.c.b16 %v1334, %v1330
    %v1719 = vpack.c.b16 %v1335, %v1331
    %v1720 = vpack.c.b16 %v1336, %v1332
    %v1721 = vpack.c.b16 %v1341, %v1337
    %v1722 = vpack.c.b16 %v1342, %v1338
    %v1723 = vpack.c.b16 %v1343, %v1339
    %v1724 = vpack.c.b16 %v1344, %v1340
    %v1725 = vpack.c.b16 %v1349, %v1345
    %v1726 = vpack.c.b16 %v1350, %v1346
    %v1727 = vpack.c.b16 %v1351, %v1347
    %v1728 = vpack.c.b16 %v1352, %v1348
    %v1729 = vpack.c.b16 %v1357, %v1353
    %v1730 = vpack.c.b16 %v1358, %v1354
    %v1731 = vpack.c.b16 %v1359, %v1355
    %v1732 = vpack.c.b16 %v1360, %v1356
    %v1733 = vpack.c.b16 %v1365, %v1361
    %v1734 = vpack.c.b16 %v1366, %v1362
    %v1735 = vpack.c.b16 %v1367, %v1363
    %v1736 = vpack.c.b16 %v1368, %v1364
    %v1737 = vpack.c.b16 %v1373, %v1369
    %v1738 = vpack.c.b16 %v1374, %v1370
    %v1739 = vpack.c.b16 %v1375, %v1371
    %v1740 = vpack.c.b16 %v1376, %v1372
    %v1741 = vpack.c.b16 %v1381, %v1377
    %v1742 = vpack.c.b16 %v1382, %v1378
    %v1743 = vpack.c.b16 %v1383, %v1379
    %v1744 = vpack.c.b16 %v1384, %v1380
    %v1745 = vpack.c.b16 %v1389, %v1385
    %v1746 = vpack.c.b16 %v1390, %v1386
    %v1747 = vpack.c.b16 %v1391, %v1387
    %v1748 = vpack.c.b16 %v1392, %v1388
    %v1749 = vpack.c.b16 %v1397, %v1393
    %v1750 = vpack.c.b16 %v1398, %v1394
    %v1751 = vpack.c.b16 %v1399, %v1395
    %v1752 = vpack.c.b16 %v1400, %v1396
    %v1753 = vpack.c.b16 %v1405, %v1401
    %v1754 = vpack.c.b16 %v1406, %v1402
    %v1755 = vpack.c.b16 %v1407, %v1403
    %v1756 = vpack.c.b16 %v1408, %v1404
    %v1757 = vpack.c.b16 %v1413, %v1409
    %v1758 = vpack.c.b16 %v1414, %v1410
    %v1759 = vpack.c.b16 %v1415, %v1411
    %v1760 = vpack.c.b16 %v1416, %v1412
    %v1761 = vpack.c.b16 %v1421, %v1417
    %v1762 = vpack.c.b16 %v1422, %v1418
    %v1763 = vpack.c.b16 %v1423, %v1419
    %v1764 = vpack.c.b16 %v1424, %v1420
    %v1765 = vpack.c.b16 %v1429, %v1425
    %v1766 = vpack.c.b16 %v1430, %v1426
    %v1767 = vpack.c.b16 %v1431, %v1427
    %v1768 = vpack.c.b16 %v1432, %v1428
    %v1769 = vpack.c.b16 %v1437, %v1433
    %v1770 = vpack.c.b16 %v1438, %v1434
    %v1771 = vpack.c.b16 %v1439, %v1435
    %v1772 = vpack.c.b16 %v1440, %v1436
    %v1773 = vpack.c.b16 %v1445, %v1441
    %v1774 = vpack.c.b16 %v1446, %v1442
    %v1775 = vpack.c.b16 %v1447, %v1443
    %v1776 = vpack.c.b16 %v1448, %v1444
    %v1777 = vpack.c.b16 %v1453, %v1449
    %v1778 = vpack.c.b16 %v1454, %v1450
    %v1779 = vpack.c.b16 %v1455, %v1451
    %v1780 = vpack.c.b16 %v1456, %v1452
    %v1781 = vpack.c.b16 %v1461, %v1457
    %v1782 = vpack.c.b16 %v1462, %v1458
    %v1783 = vpack.c.b16 %v1463, %v1459
    %v1784 = vpack.c.b16 %v1464, %v1460
    %2105 = vmatprep.subr.bf16.mxu0 %v1466
    %2106 = vmatpush1.bf16.msra.mxu0 %v1465
    %2107 = vmatprep.subr.bf16.mxu0 %v1470
    %2108 = vmatpush1.bf16.msra.mxu0 %v1469
    %2109 = vmatprep.subr.bf16.mxu0 %v1474
    %2110 = vmatpush1.bf16.msra.mxu0 %v1473
    %2111 = vmatprep.subr.bf16.mxu0 %v1478
    %2112 = vmatpush1.bf16.msra.mxu0 %v1477
    %2113 = vmatprep.subr.bf16.mxu0 %v1482
    %2114 = vmatpush1.bf16.msra.mxu0 %v1481
    %2115 = vmatprep.subr.bf16.mxu0 %v1486
    %2116 = vmatpush1.bf16.msra.mxu0 %v1485
    %2117 = vmatprep.subr.bf16.mxu0 %v1490
    %2118 = vmatpush1.bf16.msra.mxu0 %v1489
    %2119 = vmatprep.subr.bf16.mxu0 %v1494
    %2120 = vmatpush1.bf16.msra.mxu0 %v1493
    %2121 = vmatprep.subr.bf16.mxu0 %v1498
    %2122 = vmatpush1.bf16.msra.mxu0 %v1497
    %2123 = vmatprep.subr.bf16.mxu0 %v1502
    %2124 = vmatpush1.bf16.msra.mxu0 %v1501
    %2125 = vmatprep.subr.bf16.mxu0 %v1506
    %2126 = vmatpush1.bf16.msra.mxu0 %v1505
    %2127 = vmatprep.subr.bf16.mxu0 %v1510
    %2128 = vmatpush1.bf16.msra.mxu0 %v1509
    %2129 = vmatprep.subr.bf16.mxu0 %v1514
    %2130 = vmatpush1.bf16.msra.mxu0 %v1513
    %2131 = vmatprep.subr.bf16.mxu0 %v1518
    %2132 = vmatpush1.bf16.msra.mxu0 %v1517
    %2133 = vmatprep.subr.bf16.mxu0 %v1522
    %2134 = vmatpush1.bf16.msra.mxu0 %v1521
    %2135 = vmatprep.subr.bf16.mxu0 %v1526
    %2136 = vmatpush1.bf16.msra.mxu0 %v1525
    %2137 = vmatprep.mubr.bf16.mxu0 %v486
    %2138 = vmatmul.mubr.bf16.gmra.mrb[0].mxu0 %v485
    %v2139 = vpop.f32.mrb[0].mxu0
    %v2140 = vadd.f32 %v438, %v2139
    %v2141 = vpop.f32.mrb[0].mxu0
    %v2142 = vadd.f32 %v442, %v2141
    %v2143 = vpop.f32.mrb[0].mxu0
    %v2144 = vadd.f32 %v438, %v2143
    %v2145 = vpop.f32.mrb[0].mxu0
    %v2146 = vadd.f32 %v442, %v2145
    %2147 = vdwg.mxu0
    %2148 = vmatprep.subr.bf16.mxu0 %v1530
    %2149 = vmatpush1.bf16.msra.mxu0 %v1529
    %2150 = vmatprep.subr.bf16.mxu0 %v1534
    %2151 = vmatpush1.bf16.msra.mxu0 %v1533
    %2152 = vmatprep.subr.bf16.mxu0 %v1538
    %2153 = vmatpush1.bf16.msra.mxu0 %v1537
    %2154 = vmatprep.subr.bf16.mxu0 %v1542
    %2155 = vmatpush1.bf16.msra.mxu0 %v1541
    %2156 = vmatprep.subr.bf16.mxu0 %v1546
    %2157 = vmatpush1.bf16.msra.mxu0 %v1545
    %2158 = vmatprep.subr.bf16.mxu0 %v1550
    %2159 = vmatpush1.bf16.msra.mxu0 %v1549
    %2160 = vmatprep.subr.bf16.mxu0 %v1554
    %2161 = vmatpush1.bf16.msra.mxu0 %v1553
    %2162 = vmatprep.subr.bf16.mxu0 %v1558
    %2163 = vmatpush1.bf16.msra.mxu0 %v1557
    %2164 = vmatprep.subr.bf16.mxu0 %v1562
    %2165 = vmatpush1.bf16.msra.mxu0 %v1561
    %2166 = vmatprep.subr.bf16.mxu0 %v1566
    %2167 = vmatpush1.bf16.msra.mxu0 %v1565
    %2168 = vmatprep.subr.bf16.mxu0 %v1570
    %2169 = vmatpush1.bf16.msra.mxu0 %v1569
    %2170 = vmatprep.subr.bf16.mxu0 %v1574
    %2171 = vmatpush1.bf16.msra.mxu0 %v1573
    %2172 = vmatprep.subr.bf16.mxu0 %v1578
    %2173 = vmatpush1.bf16.msra.mxu0 %v1577
    %2174 = vmatprep.subr.bf16.mxu0 %v1582
    %2175 = vmatpush1.bf16.msra.mxu0 %v1581
    %2176 = vmatprep.subr.bf16.mxu0 %v1586
    %2177 = vmatpush1.bf16.msra.mxu0 %v1585
    %2178 = vmatprep.subr.bf16.mxu0 %v1590
    %2179 = vmatpush1.bf16.msra.mxu0 %v1589
    %2180 = vmatprep.mubr.bf16.mxu0 %v488
    %2181 = vmatmul.mubr.bf16.gmra.mrb[0].mxu0 %v487
    %v2182 = vpop.f32.mrb[0].mxu0
    %v2183 = vadd.f32 %v2140, %v2182
    %v2184 = vpop.f32.mrb[0].mxu0
    %v2185 = vadd.f32 %v2142, %v2184
    %v2186 = vpop.f32.mrb[0].mxu0
    %v2187 = vadd.f32 %v2144, %v2186
    %v2188 = vpop.f32.mrb[0].mxu0
    %v2189 = vadd.f32 %v2146, %v2188
    %2190 = vdwg.mxu0
    %2191 = vmatprep.subr.bf16.mxu0 %v1594
    %2192 = vmatpush1.bf16.msra.mxu0 %v1593
    %2193 = vmatprep.subr.bf16.mxu0 %v1598
    %2194 = vmatpush1.bf16.msra.mxu0 %v1597
    %2195 = vmatprep.subr.bf16.mxu0 %v1602
    %2196 = vmatpush1.bf16.msra.mxu0 %v1601
    %2197 = vmatprep.subr.bf16.mxu0 %v1606
    %2198 = vmatpush1.bf16.msra.mxu0 %v1605
    %2199 = vmatprep.subr.bf16.mxu0 %v1610
    %2200 = vmatpush1.bf16.msra.mxu0 %v1609
    %2201 = vmatprep.subr.bf16.mxu0 %v1614
    %2202 = vmatpush1.bf16.msra.mxu0 %v1613
    %2203 = vmatprep.subr.bf16.mxu0 %v1618
    %2204 = vmatpush1.bf16.msra.mxu0 %v1617
    %2205 = vmatprep.subr.bf16.mxu0 %v1622
    %2206 = vmatpush1.bf16.msra.mxu0 %v1621
    %2207 = vmatprep.subr.bf16.mxu0 %v1626
    %2208 = vmatpush1.bf16.msra.mxu0 %v1625
    %2209 = vmatprep.subr.bf16.mxu0 %v1630
    %2210 = vmatpush1.bf16.msra.mxu0 %v1629
    %2211 = vmatprep.subr.bf16.mxu0 %v1634
    %2212 = vmatpush1.bf16.msra.mxu0 %v1633
    %2213 = vmatprep.subr.bf16.mxu0 %v1638
    %2214 = vmatpush1.bf16.msra.mxu0 %v1637
    %2215 = vmatprep.subr.bf16.mxu0 %v1642
    %2216 = vmatpush1.bf16.msra.mxu0 %v1641
    %2217 = vmatprep.subr.bf16.mxu0 %v1646
    %2218 = vmatpush1.bf16.msra.mxu0 %v1645
    %2219 = vmatprep.subr.bf16.mxu0 %v1650
    %2220 = vmatpush1.bf16.msra.mxu0 %v1649
    %2221 = vmatprep.subr.bf16.mxu0 %v1654
    %2222 = vmatpush1.bf16.msra.mxu0 %v1653
    %2223 = vmatprep.mubr.bf16.mxu0 %v490
    %2224 = vmatmul.mubr.bf16.gmra.mrb[0].mxu0 %v489
    %v2225 = vpop.f32.mrb[0].mxu0
    %v2226 = vadd.f32 %v2183, %v2225
    %v2227 = vpop.f32.mrb[0].mxu0
    %v2228 = vadd.f32 %v2185, %v2227
    %v2229 = vpop.f32.mrb[0].mxu0
    %v2230 = vadd.f32 %v2187, %v2229
    %v2231 = vpop.f32.mrb[0].mxu0
    %v2232 = vadd.f32 %v2189, %v2231
    %2233 = vdwg.mxu0
    %2234 = vmatprep.subr.bf16.mxu0 %v1658
    %2235 = vmatpush1.bf16.msra.mxu0 %v1657
    %2236 = vmatprep.subr.bf16.mxu0 %v1662
    %2237 = vmatpush1.bf16.msra.mxu0 %v1661
    %2238 = vmatprep.subr.bf16.mxu0 %v1666
    %2239 = vmatpush1.bf16.msra.mxu0 %v1665
    %2240 = vmatprep.subr.bf16.mxu0 %v1670
    %2241 = vmatpush1.bf16.msra.mxu0 %v1669
    %2242 = vmatprep.subr.bf16.mxu0 %v1674
    %2243 = vmatpush1.bf16.msra.mxu0 %v1673
    %2244 = vmatprep.subr.bf16.mxu0 %v1678
    %2245 = vmatpush1.bf16.msra.mxu0 %v1677
    %2246 = vmatprep.subr.bf16.mxu0 %v1682
    %2247 = vmatpush1.bf16.msra.mxu0 %v1681
    %2248 = vmatprep.subr.bf16.mxu0 %v1686
    %2249 = vmatpush1.bf16.msra.mxu0 %v1685
    %2250 = vmatprep.subr.bf16.mxu0 %v1690
    %2251 = vmatpush1.bf16.msra.mxu0 %v1689
    %2252 = vmatprep.subr.bf16.mxu0 %v1694
    %2253 = vmatpush1.bf16.msra.mxu0 %v1693
    %2254 = vmatprep.subr.bf16.mxu0 %v1698
    %2255 = vmatpush1.bf16.msra.mxu0 %v1697
    %2256 = vmatprep.subr.bf16.mxu0 %v1702
    %2257 = vmatpush1.bf16.msra.mxu0 %v1701
    %2258 = vmatprep.subr.bf16.mxu0 %v1706
    %2259 = vmatpush1.bf16.msra.mxu0 %v1705
    %2260 = vmatprep.subr.bf16.mxu0 %v1710
    %2261 = vmatpush1.bf16.msra.mxu0 %v1709
    %2262 = vmatprep.subr.bf16.mxu0 %v1714
    %2263 = vmatpush1.bf16.msra.mxu0 %v1713
    %2264 = vmatprep.subr.bf16.mxu0 %v1718
    %2265 = vmatpush1.bf16.msra.mxu0 %v1717
    %2266 = vmatprep.mubr.bf16.mxu0 %v492
    %2267 = vmatmul.mubr.bf16.gmra.mrb[0].mxu0 %v491
    %v2268 = vpop.f32.mrb[0].mxu0
    %v2269 = vadd.f32 %v2226, %v2268
    %v2270 = vpop.f32.mrb[0].mxu0
    %v2271 = vadd.f32 %v2228, %v2270
    %v2272 = vpop.f32.mrb[0].mxu0
    %v2273 = vadd.f32 %v2230, %v2272
    %v2274 = vpop.f32.mrb[0].mxu0
    %v2275 = vadd.f32 %v2232, %v2274
    %2276 = vdwg.mxu0
    %2277 = vmatprep.subr.bf16.mxu0 %v1722
    %2278 = vmatpush1.bf16.msra.mxu0 %v1721
    %2279 = vmatprep.subr.bf16.mxu0 %v1726
    %2280 = vmatpush1.bf16.msra.mxu0 %v1725
    %2281 = vmatprep.subr.bf16.mxu0 %v1730
    %2282 = vmatpush1.bf16.msra.mxu0 %v1729
    %2283 = vmatprep.subr.bf16.mxu0 %v1734
    %2284 = vmatpush1.bf16.msra.mxu0 %v1733
    %2285 = vmatprep.subr.bf16.mxu0 %v1738
    %2286 = vmatpush1.bf16.msra.mxu0 %v1737
    %2287 = vmatprep.subr.bf16.mxu0 %v1742
    %2288 = vmatpush1.bf16.msra.mxu0 %v1741
    %2289 = vmatprep.subr.bf16.mxu0 %v1746
    %2290 = vmatpush1.bf16.msra.mxu0 %v1745
    %2291 = vmatprep.subr.bf16.mxu0 %v1750
    %2292 = vmatpush1.bf16.msra.mxu0 %v1749
    %2293 = vmatprep.subr.bf16.mxu0 %v1754
    %2294 = vmatpush1.bf16.msra.mxu0 %v1753
    %2295 = vmatprep.subr.bf16.mxu0 %v1758
    %2296 = vmatpush1.bf16.msra.mxu0 %v1757
    %2297 = vmatprep.subr.bf16.mxu0 %v1762
    %2298 = vmatpush1.bf16.msra.mxu0 %v1761
    %2299 = vmatprep.subr.bf16.mxu0 %v1766
    %2300 = vmatpush1.bf16.msra.mxu0 %v1765
    %2301 = vmatprep.subr.bf16.mxu0 %v1770
    %2302 = vmatpush1.bf16.msra.mxu0 %v1769
    %2303 = vmatprep.subr.bf16.mxu0 %v1774
    %2304 = vmatpush1.bf16.msra.mxu0 %v1773
    %2305 = vmatprep.subr.bf16.mxu0 %v1778
    %2306 = vmatpush1.bf16.msra.mxu0 %v1777
    %2307 = vmatprep.subr.bf16.mxu0 %v1782
    %2308 = vmatpush1.bf16.msra.mxu0 %v1781
    %2309 = vmatprep.mubr.bf16.mxu0 %v494
    %2310 = vmatmul.mubr.bf16.gmra.mrb[0].mxu0 %v493
    %v2311 = vpop.f32.mrb[0].mxu0
    %v2312 = vadd.f32 %v2269, %v2311
    %v2313 = vpop.f32.mrb[0].mxu0
    %v2314 = vadd.f32 %v2271, %v2313
    %v2315 = vpop.f32.mrb[0].mxu0
    %v2316 = vadd.f32 %v2273, %v2315
    %v2317 = vpop.f32.mrb[0].mxu0
    %v2318 = vadd.f32 %v2275, %v2317
    %2319 = vdwg.mxu0
    %2320 = vmatprep.subr.bf16.mxu0 %v1468
    %2321 = vmatpush1.bf16.msra.mxu0 %v1467
    %2322 = vmatprep.subr.bf16.mxu0 %v1472
    %2323 = vmatpush1.bf16.msra.mxu0 %v1471
    %2324 = vmatprep.subr.bf16.mxu0 %v1476
    %2325 = vmatpush1.bf16.msra.mxu0 %v1475
    %2326 = vmatprep.subr.bf16.mxu0 %v1480
    %2327 = vmatpush1.bf16.msra.mxu0 %v1479
    %2328 = vmatprep.subr.bf16.mxu0 %v1484
    %2329 = vmatpush1.bf16.msra.mxu0 %v1483
    %2330 = vmatprep.subr.bf16.mxu0 %v1488
    %2331 = vmatpush1.bf16.msra.mxu0 %v1487
    %2332 = vmatprep.subr.bf16.mxu0 %v1492
    %2333 = vmatpush1.bf16.msra.mxu0 %v1491
    %2334 = vmatprep.subr.bf16.mxu0 %v1496
    %2335 = vmatpush1.bf16.msra.mxu0 %v1495
    %2336 = vmatprep.subr.bf16.mxu0 %v1500
    %2337 = vmatpush1.bf16.msra.mxu0 %v1499
    %2338 = vmatprep.subr.bf16.mxu0 %v1504
    %2339 = vmatpush1.bf16.msra.mxu0 %v1503
    %2340 = vmatprep.subr.bf16.mxu0 %v1508
    %2341 = vmatpush1.bf16.msra.mxu0 %v1507
    %2342 = vmatprep.subr.bf16.mxu0 %v1512
    %2343 = vmatpush1.bf16.msra.mxu0 %v1511
    %2344 = vmatprep.subr.bf16.mxu0 %v1516
    %2345 = vmatpush1.bf16.msra.mxu0 %v1515
    %2346 = vmatprep.subr.bf16.mxu0 %v1520
    %2347 = vmatpush1.bf16.msra.mxu0 %v1519
    %2348 = vmatprep.subr.bf16.mxu0 %v1524
    %2349 = vmatpush1.bf16.msra.mxu0 %v1523
    %2350 = vmatprep.subr.bf16.mxu0 %v1528
    %2351 = vmatpush1.bf16.msra.mxu0 %v1527
    %2352 = vmatprep.mubr.bf16.mxu0 %v486
    %2353 = vmatmul.mubr.bf16.gmra.mrb[0].mxu0 %v485
    %v2354 = vpop.f32.mrb[0].mxu0
    %v2355 = vadd.f32 %v446, %v2354
    %v2356 = vpop.f32.mrb[0].mxu0
    %v2357 = vadd.f32 %v450, %v2356
    %v2358 = vpop.f32.mrb[0].mxu0
    %v2359 = vadd.f32 %v446, %v2358
    %v2360 = vpop.f32.mrb[0].mxu0
    %v2361 = vadd.f32 %v450, %v2360
    %2362 = vdwg.mxu0
    %2363 = vmatprep.subr.bf16.mxu0 %v1532
    %2364 = vmatpush1.bf16.msra.mxu0 %v1531
    %2365 = vmatprep.subr.bf16.mxu0 %v1536
    %2366 = vmatpush1.bf16.msra.mxu0 %v1535
    %2367 = vmatprep.subr.bf16.mxu0 %v1540
    %2368 = vmatpush1.bf16.msra.mxu0 %v1539
    %2369 = vmatprep.subr.bf16.mxu0 %v1544
    %2370 = vmatpush1.bf16.msra.mxu0 %v1543
    %2371 = vmatprep.subr.bf16.mxu0 %v1548
    %2372 = vmatpush1.bf16.msra.mxu0 %v1547
    %2373 = vmatprep.subr.bf16.mxu0 %v1552
    %2374 = vmatpush1.bf16.msra.mxu0 %v1551
    %2375 = vmatprep.subr.bf16.mxu0 %v1556
    %2376 = vmatpush1.bf16.msra.mxu0 %v1555
    %2377 = vmatprep.subr.bf16.mxu0 %v1560
    %2378 = vmatpush1.bf16.msra.mxu0 %v1559
    %2379 = vmatprep.subr.bf16.mxu0 %v1564
    %2380 = vmatpush1.bf16.msra.mxu0 %v1563
    %2381 = vmatprep.subr.bf16.mxu0 %v1568
    %2382 = vmatpush1.bf16.msra.mxu0 %v1567
    %2383 = vmatprep.subr.bf16.mxu0 %v1572
    %2384 = vmatpush1.bf16.msra.mxu0 %v1571
    %2385 = vmatprep.subr.bf16.mxu0 %v1576
    %2386 = vmatpush1.bf16.msra.mxu0 %v1575
    %2387 = vmatprep.subr.bf16.mxu0 %v1580
    %2388 = vmatpush1.bf16.msra.mxu0 %v1579
    %2389 = vmatprep.subr.bf16.mxu0 %v1584
    %2390 = vmatpush1.bf16.msra.mxu0 %v1583
    %2391 = vmatprep.subr.bf16.mxu0 %v1588
    %2392 = vmatpush1.bf16.msra.mxu0 %v1587
    %2393 = vmatprep.subr.bf16.mxu0 %v1592
    %2394 = vmatpush1.bf16.msra.mxu0 %v1591
    %2395 = vmatprep.mubr.bf16.mxu0 %v488
    %2396 = vmatmul.mubr.bf16.gmra.mrb[0].mxu0 %v487
    %v2397 = vpop.f32.mrb[0].mxu0
    %v2398 = vadd.f32 %v2355, %v2397
    %v2399 = vpop.f32.mrb[0].mxu0
    %v2400 = vadd.f32 %v2357, %v2399
    %v2401 = vpop.f32.mrb[0].mxu0
    %v2402 = vadd.f32 %v2359, %v2401
    %v2403 = vpop.f32.mrb[0].mxu0
    %v2404 = vadd.f32 %v2361, %v2403
    %2405 = vdwg.mxu0
    %2406 = vmatprep.subr.bf16.mxu0 %v1596
    %2407 = vmatpush1.bf16.msra.mxu0 %v1595
    %2408 = vmatprep.subr.bf16.mxu0 %v1600
    %2409 = vmatpush1.bf16.msra.mxu0 %v1599
    %2410 = vmatprep.subr.bf16.mxu0 %v1604
    %2411 = vmatpush1.bf16.msra.mxu0 %v1603
    %2412 = vmatprep.subr.bf16.mxu0 %v1608
    %2413 = vmatpush1.bf16.msra.mxu0 %v1607
    %2414 = vmatprep.subr.bf16.mxu0 %v1612
    %2415 = vmatpush1.bf16.msra.mxu0 %v1611
    %2416 = vmatprep.subr.bf16.mxu0 %v1616
    %2417 = vmatpush1.bf16.msra.mxu0 %v1615
    %2418 = vmatprep.subr.bf16.mxu0 %v1620
    %2419 = vmatpush1.bf16.msra.mxu0 %v1619
    %2420 = vmatprep.subr.bf16.mxu0 %v1624
    %2421 = vmatpush1.bf16.msra.mxu0 %v1623
    %2422 = vmatprep.subr.bf16.mxu0 %v1628
    %2423 = vmatpush1.bf16.msra.mxu0 %v1627
    %2424 = vmatprep.subr.bf16.mxu0 %v1632
    %2425 = vmatpush1.bf16.msra.mxu0 %v1631
    %2426 = vmatprep.subr.bf16.mxu0 %v1636
    %2427 = vmatpush1.bf16.msra.mxu0 %v1635
    %2428 = vmatprep.subr.bf16.mxu0 %v1640
    %2429 = vmatpush1.bf16.msra.mxu0 %v1639
    %2430 = vmatprep.subr.bf16.mxu0 %v1644
    %2431 = vmatpush1.bf16.msra.mxu0 %v1643
    %2432 = vmatprep.subr.bf16.mxu0 %v1648
    %2433 = vmatpush1.bf16.msra.mxu0 %v1647
    %2434 = vmatprep.subr.bf16.mxu0 %v1652
    %2435 = vmatpush1.bf16.msra.mxu0 %v1651
    %2436 = vmatprep.subr.bf16.mxu0 %v1656
    %2437 = vmatpush1.bf16.msra.mxu0 %v1655
    %2438 = vmatprep.mubr.bf16.mxu0 %v490
    %2439 = vmatmul.mubr.bf16.gmra.mrb[0].mxu0 %v489
    %v2440 = vpop.f32.mrb[0].mxu0
    %v2441 = vadd.f32 %v2398, %v2440
    %v2442 = vpop.f32.mrb[0].mxu0
    %v2443 = vadd.f32 %v2400, %v2442
    %v2444 = vpop.f32.mrb[0].mxu0
    %v2445 = vadd.f32 %v2402, %v2444
    %v2446 = vpop.f32.mrb[0].mxu0
    %v2447 = vadd.f32 %v2404, %v2446
    %2448 = vdwg.mxu0
    %2449 = vmatprep.subr.bf16.mxu0 %v1660
    %2450 = vmatpush1.bf16.msra.mxu0 %v1659
    %2451 = vmatprep.subr.bf16.mxu0 %v1664
    %2452 = vmatpush1.bf16.msra.mxu0 %v1663
    %2453 = vmatprep.subr.bf16.mxu0 %v1668
    %2454 = vmatpush1.bf16.msra.mxu0 %v1667
    %2455 = vmatprep.subr.bf16.mxu0 %v1672
    %2456 = vmatpush1.bf16.msra.mxu0 %v1671
    %2457 = vmatprep.subr.bf16.mxu0 %v1676
    %2458 = vmatpush1.bf16.msra.mxu0 %v1675
    %2459 = vmatprep.subr.bf16.mxu0 %v1680
    %2460 = vmatpush1.bf16.msra.mxu0 %v1679
    %2461 = vmatprep.subr.bf16.mxu0 %v1684
    %2462 = vmatpush1.bf16.msra.mxu0 %v1683
    %2463 = vmatprep.subr.bf16.mxu0 %v1688
    %2464 = vmatpush1.bf16.msra.mxu0 %v1687
    %2465 = vmatprep.subr.bf16.mxu0 %v1692
    %2466 = vmatpush1.bf16.msra.mxu0 %v1691
    %2467 = vmatprep.subr.bf16.mxu0 %v1696
    %2468 = vmatpush1.bf16.msra.mxu0 %v1695
    %2469 = vmatprep.subr.bf16.mxu0 %v1700
    %2470 = vmatpush1.bf16.msra.mxu0 %v1699
    %2471 = vmatprep.subr.bf16.mxu0 %v1704
    %2472 = vmatpush1.bf16.msra.mxu0 %v1703
    %2473 = vmatprep.subr.bf16.mxu0 %v1708
    %2474 = vmatpush1.bf16.msra.mxu0 %v1707
    %2475 = vmatprep.subr.bf16.mxu0 %v1712
    %2476 = vmatpush1.bf16.msra.mxu0 %v1711
    %2477 = vmatprep.subr.bf16.mxu0 %v1716
    %2478 = vmatpush1.bf16.msra.mxu0 %v1715
    %2479 = vmatprep.subr.bf16.mxu0 %v1720
    %2480 = vmatpush1.bf16.msra.mxu0 %v1719
    %2481 = vmatprep.mubr.bf16.mxu0 %v492
    %2482 = vmatmul.mubr.bf16.gmra.mrb[0].mxu0 %v491
    %v2483 = vpop.f32.mrb[0].mxu0
    %v2484 = vadd.f32 %v2441, %v2483
    %v2485 = vpop.f32.mrb[0].mxu0
    %v2486 = vadd.f32 %v2443, %v2485
    %v2487 = vpop.f32.mrb[0].mxu0
    %v2488 = vadd.f32 %v2445, %v2487
    %v2489 = vpop.f32.mrb[0].mxu0
    %v2490 = vadd.f32 %v2447, %v2489
    %2491 = vdwg.mxu0
    %2492 = vmatprep.subr.bf16.mxu0 %v1724
    %2493 = vmatpush1.bf16.msra.mxu0 %v1723
    %2494 = vmatprep.subr.bf16.mxu0 %v1728
    %2495 = vmatpush1.bf16.msra.mxu0 %v1727
    %2496 = vmatprep.subr.bf16.mxu0 %v1732
    %2497 = vmatpush1.bf16.msra.mxu0 %v1731
    %2498 = vmatprep.subr.bf16.mxu0 %v1736
    %2499 = vmatpush1.bf16.msra.mxu0 %v1735
    %2500 = vmatprep.subr.bf16.mxu0 %v1740
    %2501 = vmatpush1.bf16.msra.mxu0 %v1739
    %2502 = vmatprep.subr.bf16.mxu0 %v1744
    %2503 = vmatpush1.bf16.msra.mxu0 %v1743
    %2504 = vmatprep.subr.bf16.mxu0 %v1748
    %2505 = vmatpush1.bf16.msra.mxu0 %v1747
    %2506 = vmatprep.subr.bf16.mxu0 %v1752
    %2507 = vmatpush1.bf16.msra.mxu0 %v1751
    %2508 = vmatprep.subr.bf16.mxu0 %v1756
    %2509 = vmatpush1.bf16.msra.mxu0 %v1755
    %2510 = vmatprep.subr.bf16.mxu0 %v1760
    %2511 = vmatpush1.bf16.msra.mxu0 %v1759
    %2512 = vmatprep.subr.bf16.mxu0 %v1764
    %2513 = vmatpush1.bf16.msra.mxu0 %v1763
    %2514 = vmatprep.subr.bf16.mxu0 %v1768
    %2515 = vmatpush1.bf16.msra.mxu0 %v1767
    %2516 = vmatprep.subr.bf16.mxu0 %v1772
    %2517 = vmatpush1.bf16.msra.mxu0 %v1771
    %2518 = vmatprep.subr.bf16.mxu0 %v1776
    %2519 = vmatpush1.bf16.msra.mxu0 %v1775
    %2520 = vmatprep.subr.bf16.mxu0 %v1780
    %2521 = vmatpush1.bf16.msra.mxu0 %v1779
    %2522 = vmatprep.subr.bf16.mxu0 %v1784
    %2523 = vmatpush1.bf16.msra.mxu0 %v1783
    %2524 = vmatprep.mubr.bf16.mxu0 %v494
    %2525 = vmatmul.mubr.bf16.gmra.mrb[0].mxu0 %v493
    %v2526 = vpop.f32.mrb[0].mxu0
    %v2527 = vadd.f32 %v2484, %v2526
    %v2528 = vpop.f32.mrb[0].mxu0
    %v2529 = vadd.f32 %v2486, %v2528
    %v2530 = vpop.f32.mrb[0].mxu0
    %v2531 = vadd.f32 %v2488, %v2530
    %v2532 = vpop.f32.mrb[0].mxu0
    %v2533 = vadd.f32 %v2490, %v2532
    %2534 = vdwg.mxu0
    %v2535 = vld [vmem:[#allocation2] sm:$0xf]
    %v2536 = vld [vmem:[#allocation2 + $0x4] sm:$0xf]
    %v2537 = vld [vmem:[#allocation5] sm:$0xff]
    %v2538 = vld [vmem:[#allocation5 + $0x8] sm:$0xff]
    %v2539 = vld [vmem:[#allocation5 + $0x10] sm:$0xff]
    %v2540 = vld [vmem:[#allocation5 + $0x18] sm:$0xff]
    %v2541 = vld [vmem:[#allocation5 + $0x20] sm:$0xff]
    %v2542 = vld [vmem:[#allocation5 + $0x28] sm:$0xff]
    %v2543 = vld [vmem:[#allocation5 + $0x30] sm:$0xff]
    %v2544 = vld [vmem:[#allocation5 + $0x38] sm:$0xff]
    %v2545 = vld [vmem:[#allocation5 + $0x40] sm:$0xff]
    %v2546 = vld [vmem:[#allocation5 + $0x48] sm:$0xff]
    %v2547 = vld [vmem:[#allocation5 + $0x50] sm:$0xff]
    %v2548 = vld [vmem:[#allocation5 + $0x58] sm:$0xff]
    %v2549 = vld [vmem:[#allocation5 + $0x60] sm:$0xff]
    %v2550 = vld [vmem:[#allocation5 + $0x68] sm:$0xff]
    %v2551 = vld [vmem:[#allocation5 + $0x70] sm:$0xff]
    %v2552 = vld [vmem:[#allocation5 + $0x78] sm:$0xff]
    %v2553 = vld [vmem:[#allocation5 + $0x80] sm:$0xff]
    %v2554 = vld [vmem:[#allocation5 + $0x88] sm:$0xff]
    %v2555 = vld [vmem:[#allocation5 + $0x90] sm:$0xff]
    %v2556 = vld [vmem:[#allocation5 + $0x98] sm:$0xff]
    %v2557 = vld [vmem:[#allocation5 + $0xa0] sm:$0xff]
    %v2558 = vld [vmem:[#allocation5 + $0xa8] sm:$0xff]
    %v2559 = vld [vmem:[#allocation5 + $0xb0] sm:$0xff]
    %v2560 = vld [vmem:[#allocation5 + $0xb8] sm:$0xff]
    %v2561 = vld [vmem:[#allocation5 + $0xc0] sm:$0xff]
    %v2562 = vld [vmem:[#allocation5 + $0xc8] sm:$0xff]
    %v2563 = vld [vmem:[#allocation5 + $0xd0] sm:$0xff]
    %v2564 = vld [vmem:[#allocation5 + $0xd8] sm:$0xff]
    %v2565 = vld [vmem:[#allocation5 + $0xe0] sm:$0xff]
    %v2566 = vld [vmem:[#allocation5 + $0xe8] sm:$0xff]
    %v2567 = vld [vmem:[#allocation5 + $0xf0] sm:$0xff]
    %v2568 = vld [vmem:[#allocation5 + $0xf8] sm:$0xff]
    %v2569 = vld [vmem:[#allocation7] sm:$0xf]
    %v2571 = vlaneseq
    %v2572 = vshrl.u32 %v2571, 7
    %v2573 = vsub.s32 0, %v2572
    %v2574 = vrot.slane %v2569, %v2573
    %v2575 = vlaneseq
    %v2576 = vshrl.u32 %v2575, 7
    %v2577 = vsub.s32 1, %v2576
    %v2578 = vrot.slane %v2569, %v2577
    %v2579 = vlaneseq
    %v2580 = vshrl.u32 %v2579, 7
    %v2581 = vsub.s32 2, %v2580
    %v2582 = vrot.slane %v2569, %v2581
    %v2583 = vlaneseq
    %v2584 = vshrl.u32 %v2583, 7
    %v2585 = vsub.s32 3, %v2584
    %v2586 = vrot.slane %v2569, %v2585
    %v2593 = vunpack.c.l.b16 %v2535
    %v2594 = vunpack.c.l.b16 %v2536
    %v2595 = vpack.c.b16 %v2594, %v2593
    %v2629 = vunpack.c.l.b16 %v2537
    %v2630 = vunpack.c.h.b16 %v2537
    %v2631 = vunpack.c.l.b16 %v2538
    %v2632 = vunpack.c.h.b16 %v2538
    %v2633 = vunpack.c.l.b16 %v2539
    %v2634 = vunpack.c.h.b16 %v2539
    %v2635 = vunpack.c.l.b16 %v2540
    %v2636 = vunpack.c.h.b16 %v2540
    %v2637 = vunpack.c.l.b16 %v2541
    %v2638 = vunpack.c.h.b16 %v2541
    %v2639 = vunpack.c.l.b16 %v2542
    %v2640 = vunpack.c.h.b16 %v2542
    %v2641 = vunpack.c.l.b16 %v2543
    %v2642 = vunpack.c.h.b16 %v2543
    %v2643 = vunpack.c.l.b16 %v2544
    %v2644 = vunpack.c.h.b16 %v2544
    %v2645 = vunpack.c.l.b16 %v2545
    %v2646 = vunpack.c.h.b16 %v2545
    %v2647 = vunpack.c.l.b16 %v2546
    %v2648 = vunpack.c.h.b16 %v2546
    %v2649 = vunpack.c.l.b16 %v2547
    %v2650 = vunpack.c.h.b16 %v2547
    %v2651 = vunpack.c.l.b16 %v2548
    %v2652 = vunpack.c.h.b16 %v2548
    %v2653 = vunpack.c.l.b16 %v2549
    %v2654 = vunpack.c.h.b16 %v2549
    %v2655 = vunpack.c.l.b16 %v2550
    %v2656 = vunpack.c.h.b16 %v2550
    %v2657 = vunpack.c.l.b16 %v2551
    %v2658 = vunpack.c.h.b16 %v2551
    %v2659 = vunpack.c.l.b16 %v2552
    %v2660 = vunpack.c.h.b16 %v2552
    %v2661 = vunpack.c.l.b16 %v2553
    %v2662 = vunpack.c.h.b16 %v2553
    %v2663 = vunpack.c.l.b16 %v2554
    %v2664 = vunpack.c.h.b16 %v2554
    %v2665 = vunpack.c.l.b16 %v2555
    %v2666 = vunpack.c.h.b16 %v2555
    %v2667 = vunpack.c.l.b16 %v2556
    %v2668 = vunpack.c.h.b16 %v2556
    %v2669 = vunpack.c.l.b16 %v2557
    %v2670 = vunpack.c.h.b16 %v2557
    %v2671 = vunpack.c.l.b16 %v2558
    %v2672 = vunpack.c.h.b16 %v2558
    %v2673 = vunpack.c.l.b16 %v2559
    %v2674 = vunpack.c.h.b16 %v2559
    %v2675 = vunpack.c.l.b16 %v2560
    %v2676 = vunpack.c.h.b16 %v2560
    %v2677 = vunpack.c.l.b16 %v2561
    %v2678 = vunpack.c.h.b16 %v2561
    %v2679 = vunpack.c.l.b16 %v2562
    %v2680 = vunpack.c.h.b16 %v2562
    %v2681 = vunpack.c.l.b16 %v2563
    %v2682 = vunpack.c.h.b16 %v2563
    %v2683 = vunpack.c.l.b16 %v2564
    %v2684 = vunpack.c.h.b16 %v2564
    %v2685 = vunpack.c.l.b16 %v2565
    %v2686 = vunpack.c.h.b16 %v2565
    %v2687 = vunpack.c.l.b16 %v2566
    %v2688 = vunpack.c.h.b16 %v2566
    %v2689 = vunpack.c.l.b16 %v2567
    %v2690 = vunpack.c.h.b16 %v2567
    %v2691 = vunpack.c.l.b16 %v2568
    %v2692 = vunpack.c.h.b16 %v2568
    %v2693 = vpack.c.b16 %v2633, %v2629
    %v2694 = vpack.c.b16 %v2634, %v2630
    %v2695 = vpack.c.b16 %v2635, %v2631
    %v2696 = vpack.c.b16 %v2636, %v2632
    %v2697 = vpack.c.b16 %v2641, %v2637
    %v2698 = vpack.c.b16 %v2642, %v2638
    %v2699 = vpack.c.b16 %v2643, %v2639
    %v2700 = vpack.c.b16 %v2644, %v2640
    %v2701 = vpack.c.b16 %v2649, %v2645
    %v2702 = vpack.c.b16 %v2650, %v2646
    %v2703 = vpack.c.b16 %v2651, %v2647
    %v2704 = vpack.c.b16 %v2652, %v2648
    %v2705 = vpack.c.b16 %v2657, %v2653
    %v2706 = vpack.c.b16 %v2658, %v2654
    %v2707 = vpack.c.b16 %v2659, %v2655
    %v2708 = vpack.c.b16 %v2660, %v2656
    %v2709 = vpack.c.b16 %v2665, %v2661
    %v2710 = vpack.c.b16 %v2666, %v2662
    %v2711 = vpack.c.b16 %v2667, %v2663
    %v2712 = vpack.c.b16 %v2668, %v2664
    %v2713 = vpack.c.b16 %v2673, %v2669
    %v2714 = vpack.c.b16 %v2674, %v2670
    %v2715 = vpack.c.b16 %v2675, %v2671
    %v2716 = vpack.c.b16 %v2676, %v2672
    %v2717 = vpack.c.b16 %v2681, %v2677
    %v2718 = vpack.c.b16 %v2682, %v2678
    %v2719 = vpack.c.b16 %v2683, %v2679
    %v2720 = vpack.c.b16 %v2684, %v2680
    %v2721 = vpack.c.b16 %v2689, %v2685
    %v2722 = vpack.c.b16 %v2690, %v2686
    %v2723 = vpack.c.b16 %v2691, %v2687
    %v2724 = vpack.c.b16 %v2692, %v2688
    %2757 = vmatprep.subr.bf16.mxu0 %v2694
    %2758 = vmatpush1.bf16.msra.mxu0 %v2693
    %2759 = vmatprep.subr.bf16.mxu0 %v2698
    %2760 = vmatpush1.bf16.msra.mxu0 %v2697
    %2761 = vmatprep.subr.bf16.mxu0 %v2702
    %2762 = vmatpush1.bf16.msra.mxu0 %v2701
    %2763 = vmatprep.subr.bf16.mxu0 %v2706
    %2764 = vmatpush1.bf16.msra.mxu0 %v2705
    %2765 = vmatprep.subr.bf16.mxu0 %v2710
    %2766 = vmatpush1.bf16.msra.mxu0 %v2709
    %2767 = vmatprep.subr.bf16.mxu0 %v2714
    %2768 = vmatpush1.bf16.msra.mxu0 %v2713
    %2769 = vmatprep.subr.bf16.mxu0 %v2718
    %2770 = vmatpush1.bf16.msra.mxu0 %v2717
    %2771 = vmatprep.subr.bf16.mxu0 %v2722
    %2772 = vmatpush1.bf16.msra.mxu0 %v2721
    %2773 = vmatprep.subr.bf16.mxu0 0
    %2774 = vmatpush1.bf16.msra.mxu0 0
    %2775 = vmatprep.subr.bf16.mxu0 0
    %2776 = vmatpush1.bf16.msra.mxu0 0
    %2777 = vmatprep.subr.bf16.mxu0 0
    %2778 = vmatpush1.bf16.msra.mxu0 0
    %2779 = vmatprep.subr.bf16.mxu0 0
    %2780 = vmatpush1.bf16.msra.mxu0 0
    %2781 = vmatprep.subr.bf16.mxu0 0
    %2782 = vmatpush1.bf16.msra.mxu0 0
    %2783 = vmatprep.subr.bf16.mxu0 0
    %2784 = vmatpush1.bf16.msra.mxu0 0
    %2785 = vmatprep.subr.bf16.mxu0 0
    %2786 = vmatpush1.bf16.msra.mxu0 0
    %2787 = vmatprep.subr.bf16.mxu0 0
    %2788 = vmatpush1.bf16.msra.mxu0 0
    %2789 = vmatprep.mubr.bf16.mxu0 0
    %2790 = vmatmul.mubr.bf16.gmra.mrb[0].mxu0 %v2595
    %v2791 = vpop.f32.mrb[0].mxu0
    %v2792 = vadd.f32 %v2574, %v2791
    %v2793 = vpop.f32.mrb[0].mxu0
    %v2794 = vadd.f32 %v2578, %v2793
    %v2795 = vpop.f32.mrb[0].mxu0
    %v2796 = vadd.f32 %v2574, %v2795
    %v2797 = vpop.f32.mrb[0].mxu0
    %v2798 = vadd.f32 %v2578, %v2797
    %2799 = vdwg.mxu0
    %2800 = vmatprep.subr.bf16.mxu0 %v2696
    %2801 = vmatpush1.bf16.msra.mxu0 %v2695
    %2802 = vmatprep.subr.bf16.mxu0 %v2700
    %2803 = vmatpush1.bf16.msra.mxu0 %v2699
    %2804 = vmatprep.subr.bf16.mxu0 %v2704
    %2805 = vmatpush1.bf16.msra.mxu0 %v2703
    %2806 = vmatprep.subr.bf16.mxu0 %v2708
    %2807 = vmatpush1.bf16.msra.mxu0 %v2707
    %2808 = vmatprep.subr.bf16.mxu0 %v2712
    %2809 = vmatpush1.bf16.msra.mxu0 %v2711
    %2810 = vmatprep.subr.bf16.mxu0 %v2716
    %2811 = vmatpush1.bf16.msra.mxu0 %v2715
    %2812 = vmatprep.subr.bf16.mxu0 %v2720
    %2813 = vmatpush1.bf16.msra.mxu0 %v2719
    %2814 = vmatprep.subr.bf16.mxu0 %v2724
    %2815 = vmatpush1.bf16.msra.mxu0 %v2723
    %2816 = vmatprep.subr.bf16.mxu0 0
    %2817 = vmatpush1.bf16.msra.mxu0 0
    %2818 = vmatprep.subr.bf16.mxu0 0
    %2819 = vmatpush1.bf16.msra.mxu0 0
    %2820 = vmatprep.subr.bf16.mxu0 0
    %2821 = vmatpush1.bf16.msra.mxu0 0
    %2822 = vmatprep.subr.bf16.mxu0 0
    %2823 = vmatpush1.bf16.msra.mxu0 0
    %2824 = vmatprep.subr.bf16.mxu0 0
    %2825 = vmatpush1.bf16.msra.mxu0 0
    %2826 = vmatprep.subr.bf16.mxu0 0
    %2827 = vmatpush1.bf16.msra.mxu0 0
    %2828 = vmatprep.subr.bf16.mxu0 0
    %2829 = vmatpush1.bf16.msra.mxu0 0
    %2830 = vmatprep.subr.bf16.mxu0 0
    %2831 = vmatpush1.bf16.msra.mxu0 0
    %2832 = vmatprep.mubr.bf16.mxu0 0
    %2833 = vmatmul.mubr.bf16.gmra.mrb[0].mxu0 %v2595
    %v2834 = vpop.f32.mrb[0].mxu0
    %v2835 = vadd.f32 %v2582, %v2834
    %v2836 = vpop.f32.mrb[0].mxu0
    %v2837 = vadd.f32 %v2586, %v2836
    %v2838 = vpop.f32.mrb[0].mxu0
    %v2839 = vadd.f32 %v2582, %v2838
    %v2840 = vpop.f32.mrb[0].mxu0
    %v2841 = vadd.f32 %v2586, %v2840
    %2842 = vdwg.mxu0
    %v2843 = vadd.f32 %v2792, %v2312
    %v2844 = vadd.f32 %v2794, %v2314
    %v2845 = vadd.f32 %v2835, %v2527
    %v2846 = vadd.f32 %v2837, %v2529
    %v2847 = vadd.f32 %v2796, %v2316
    %v2848 = vadd.f32 %v2798, %v2318
    %v2849 = vadd.f32 %v2839, %v2531
    %v2850 = vadd.f32 %v2841, %v2533
    %v2851 = vmax.f32 %v2843, 0.0
    %v2852 = vmax.f32 %v2844, 0.0
    %v2853 = vmax.f32 %v2845, 0.0
    %v2854 = vmax.f32 %v2846, 0.0
    %v2855 = vmax.f32 %v2847, 0.0
    %v2856 = vmax.f32 %v2848, 0.0
    %v2857 = vmax.f32 %v2849, 0.0
    %v2858 = vmax.f32 %v2850, 0.0
    %v2859 = vpack.c.bf16 %v2855, %v2851
    %v2860 = vpack.c.bf16 %v2856, %v2852
    %v2861 = vpack.c.bf16 %v2857, %v2853
    %v2862 = vpack.c.bf16 %v2858, %v2854
    %v2867 = vunpack.c.l.b16 %v2859
    %v2868 = vunpack.c.l.b16 %v2860
    %v2869 = vunpack.c.l.b16 %v2861
    %v2870 = vunpack.c.l.b16 %v2862
    %v2871 = vunpack.c.h.b16 %v2859
    %v2872 = vunpack.c.h.b16 %v2860
    %v2873 = vunpack.c.h.b16 %v2861
    %v2874 = vunpack.c.h.b16 %v2862
    %v2875 = vpack.c.b16 %v2868, %v2867
    %v2876 = vpack.c.b16 %v2870, %v2869
    %v2877 = vpack.c.b16 %v2872, %v2871
    %v2878 = vpack.c.b16 %v2874, %v2873
    %2883 = vst [vmem:[#allocation13] sm:$0xff] %v2875
    %2884 = vst [vmem:[#allocation13 + $0x8] sm:$0xff] %v2876
    %2885 = vst [vmem:[#allocation13 + $0x10] sm:$0xff] %v2877
    %2886 = vst [vmem:[#allocation13 + $0x18] sm:$0xff] %v2878
    %v2887 = vmax.f32 %v2312, 0.0
    %v2888 = vmax.f32 %v2314, 0.0
    %v2889 = vmax.f32 %v2527, 0.0
    %v2890 = vmax.f32 %v2529, 0.0
    %v2891 = vmax.f32 %v2316, 0.0
    %v2892 = vmax.f32 %v2318, 0.0
    %v2893 = vmax.f32 %v2531, 0.0
    %v2894 = vmax.f32 %v2533, 0.0
    %v2895 = vpack.c.bf16 %v2891, %v2887
    %v2896 = vpack.c.bf16 %v2892, %v2888
    %v2897 = vpack.c.bf16 %v2893, %v2889
    %v2898 = vpack.c.bf16 %v2894, %v2890
    %v2903 = vunpack.c.l.b16 %v2895
    %v2904 = vunpack.c.l.b16 %v2896
    %v2905 = vunpack.c.l.b16 %v2897
    %v2906 = vunpack.c.l.b16 %v2898
    %v2907 = vunpack.c.h.b16 %v2895
    %v2908 = vunpack.c.h.b16 %v2896
    %v2909 = vunpack.c.h.b16 %v2897
    %v2910 = vunpack.c.h.b16 %v2898
    %v2911 = vpack.c.b16 %v2904, %v2903
    %v2912 = vpack.c.b16 %v2906, %v2905
    %v2913 = vpack.c.b16 %v2908, %v2907
    %v2914 = vpack.c.b16 %v2910, %v2909
    %s2919 = scalar_lea.vmem [#allocation13], 32
    %2920 = vst [vmem:[%s2919] sm:$0xff] %v2911
    %2921 = vst [vmem:[%s2919 + $0x8] sm:$0xff] %v2912
    %2922 = vst [vmem:[%s2919 + $0x10] sm:$0xff] %v2913
    %2923 = vst [vmem:[%s2919 + $0x18] sm:$0xff] %v2914
    // Predicated region
    $region50: #{tpu_custom_call.1} parent=1 // pred_check
      _
    $region51: #{tpu_custom_call.1} parent=1 // pred_check_branch
      %2925 = sbr.rel (0) target = $region53
    $region52: #{tpu_custom_call.1} parent=1 // pred_region
      %s2927 = ssub.s32 1024, 1024
      %2928 = vsyncadd [#allocation4], %s2927
      %s2929 = sshll.u32 [#allocation13], 4
      %s2930 = int_to_ptr.vmem [resolvable:$true] %s2929
      %2935 = dma.vmem_to_hbm [thread:$0]  %s2930, 1024, %s6, [#allocation4], 256, 256, 16
    $region53: #{tpu_custom_call.1} parent=1 // pred_fallthru
      _
    // Predicated region
    $region54: #{tpu_custom_call.1} parent=1 // pred_check
      _
    $region55: #{tpu_custom_call.1} parent=1 // pred_check_branch
      %2937 = sbr.rel (0) target = $region57
    $region56: #{tpu_custom_call.1} parent=1 // pred_region
      %2938 = dma.done [#allocation4], 1024
    $region57: #{tpu_custom_call.1} parent=1 // pred_fallthru
      _
    %2939 = vsyncpa [#allocation3], 1
    %2940 = vsyncpa [#allocation6], 1
    %2941 = vsyncpa [#allocation9], 1
    %2942 = vsyncpa [#allocation12], 1
    %2943 = vsyncpa [#allocation4], 1

</llo_original>
